<compile_context>
chip_gen: v7x
topology: tpu7x:2x2x1
jax: 0.10.0
libtpu: 0.0.40
codegen_flags: <defaults>
</compile_context>

<pallas_src>
import functools

import jax
import jax.numpy as jnp
from jax.experimental import pallas as pl
from jax.experimental.pallas import tpu as pltpu

PRIMITIVES = ("none", "skip_connect", "ffn_relu", "ffn_tanh")
NUM_OPS = len(PRIMITIVES)


def _round_up(x, m):
    return (x + m - 1) // m * m


def _cell_kernel(arch_ref, s0_ref, m_ref, w_ref, b_ref, o_ref, *,
                 steps, d_model, compute_dtype):
    # arch_ref: (E, NUM_OPS) f32 in SMEM        (all edges' architecture weights)
    # s0_ref:   (tm, D)  input-state token tile
    # m_ref:    (tm, 1)  padding-mask tile
    # w_ref:    (E, D, 2D) stacked [Wa | Wb] per edge (bf16)
    # b_ref:    (E, 1, 2D) stacked [ba | bb] per edge (f32)
    # o_ref:    (steps, tm, D) all intermediate states for this tile
    x0 = s0_ref[...].astype(jnp.float32)
    mask = m_ref[...]                                     # (tm, 1) f32

    states = [x0]
    e = 0
    # Edge count is tiny and static -> unroll the whole DAG inside the kernel.
    for i in range(steps):
        acc = None
        for j in range(i + 1):
            h = states[j]                                 # (tm, D) f32
            # One wide matmul produces both FFN branches: (tm, 2D), f32 acc.
            hw = jnp.dot(h.astype(compute_dtype), w_ref[e],
                         preferred_element_type=jnp.float32) + b_ref[e]
            ha = jnp.maximum(hw[:, :d_model], 0.0)        # ffn_relu branch
            hb = jnp.tanh(hw[:, d_model:])                # ffn_tanh branch (f32 EUP)
            # arch_ref[e, 0] is the 'none' primitive -> contributes nothing.
            mixed = (arch_ref[e, 1] * h
                     + arch_ref[e, 2] * ha
                     + arch_ref[e, 3] * hb) * mask
            acc = mixed if acc is None else acc + mixed
            e += 1
        states.append(acc)
        o_ref[i] = acc.astype(o_ref.dtype)


def cell_forward(s0, masks, lengths, arch_w, w_stack, b_stack, steps, *,
                 tm=512, compute_dtype=jnp.bfloat16):
    """Mirrors Cell.forward: returns [s0, s1, ..., s_steps].

    s0:      (N, D) flattened (B*L, d_model) tokens (f32)
    masks:   (N, 1) padding mask (f32)
    lengths: (B,)   accepted for API parity; the chosen primitives are
                    token-wise and do not consume it.
    arch_w:  (num_edges, NUM_OPS) architecture weights (softmaxed alphas)
    w_stack: (num_edges, D, 2D) per-edge [Wa | Wb] (bf16)
    b_stack: (num_edges, 1, 2D) per-edge [ba | bb] (f32)
    """
    # TODO(synk): PRIMITIVES/OPS are undefined in the reference source; a
    # representative zero/identity/FFN primitive set is implemented instead.
    del lengths
    N, D = s0.shape
    E = steps * (steps + 1) // 2
    assert arch_w.shape == (E, NUM_OPS)

    # Token tile: big (<=512) multiple of 8; pad N up instead of asserting.
    tm_eff = min(tm, _round_up(N, 8))
    n_pad = _round_up(N, tm_eff)
    if n_pad != N:
        s0_p = jnp.pad(s0, ((0, n_pad - N), (0, 0)))
        m_p = jnp.pad(masks, ((0, n_pad - N), (0, 0)))   # pad mask = 0 -> zero output
    else:
        s0_p, m_p = s0, masks
    n_tiles = n_pad // tm_eff

    kernel = functools.partial(_cell_kernel, steps=steps, d_model=D,
                               compute_dtype=compute_dtype)

    out = pl.pallas_call(
        kernel,
        out_shape=jax.ShapeDtypeStruct((steps, n_pad, D), s0.dtype),
        grid=(n_tiles,),
        in_specs=[
            pl.BlockSpec(memory_space=pltpu.MemorySpace.SMEM),       # arch weights (all edges)
            pl.BlockSpec((tm_eff, D), lambda i: (i, 0)),             # s0 tile
            pl.BlockSpec((tm_eff, 1), lambda i: (i, 0)),             # mask tile
            pl.BlockSpec((E, D, 2 * D), lambda i: (0, 0, 0)),        # stacked [Wa|Wb]
            pl.BlockSpec((E, 1, 2 * D), lambda i: (0, 0, 0)),        # stacked [ba|bb]
        ],
        out_specs=pl.BlockSpec((steps, tm_eff, D), lambda i: (0, i, 0)),
        compiler_params=pltpu.CompilerParams(
            dimension_semantics=("parallel",)),
    )(arch_w, s0_p, m_p, w_stack, b_stack)

    states = [s0]
    for i in range(steps):
        states.append(out[i, :N, :])
    return states


def init_cell_params(key, d_model, steps, *, compute_dtype=jnp.bfloat16):
    """Stacked per-edge parameters: [Wa | Wb] -> (E, D, 2D), [ba | bb] -> (E, 1, 2D)."""
    E = steps * (steps + 1) // 2
    kw, kb = jax.random.split(key)
    scale = 1.0 / jnp.sqrt(jnp.float32(d_model))
    w = jax.random.normal(kw, (E, d_model, 2 * d_model), jnp.float32) * scale
    b = jax.random.normal(kb, (E, 1, 2 * d_model), jnp.float32) * 0.01
    return w.astype(compute_dtype), b.astype(jnp.float32)


def cell_reference(s0, masks, arch_w, w_stack, b_stack, steps,
                   compute_dtype=jnp.bfloat16):
    """Pure-JAX reference with identical math (for correctness check)."""
    D = s0.shape[1]
    states = [s0.astype(jnp.float32)]
    e = 0
    for _i in range(steps):
        acc = None
        for j in range(_i + 1):
            h = states[j]
            hw = jnp.dot(h.astype(compute_dtype), w_stack[e],
                         preferred_element_type=jnp.float32) + b_stack[e]
            ha = jnp.maximum(hw[:, :D], 0.0)
            hb = jnp.tanh(hw[:, D:])
            mixed = (arch_w[e, 1] * h + arch_w[e, 2] * ha
                     + arch_w[e, 3] * hb) * masks
            acc = mixed if acc is None else acc + mixed
            e += 1
        states.append(acc)
    return states


if __name__ == "__main__":
    B, L, D = 2, 16, 128     # d_model = 128
    STEPS = 3
    NUM_EDGES = STEPS * (STEPS + 1) // 2

    key = jax.random.PRNGKey(0)
    k_x, k_w, k_p = jax.random.split(key, 3)

    # Inputs (PyTorch would be (B, L, D) + (B, L) mask); flatten to tokens-major.
    x = jax.random.normal(k_x, (B, L, D), jnp.float32)
    lengths = jnp.array([L, L - 6], dtype=jnp.int32)
    mask_bl = (jnp.arange(L)[None, :] < lengths[:, None]).astype(jnp.float32)

    s0 = x.reshape(B * L, D)
    masks = mask_bl.reshape(B * L, 1)

    # Architecture weights: softmax over ops per edge (like F.softmax(alphas)).
    logits = jax.random.normal(k_w, (NUM_EDGES, NUM_OPS), jnp.float32)
    arch_weights = jax.nn.softmax(logits, axis=-1)

    w_stack, b_stack = init_cell_params(k_p, D, STEPS)

    states = cell_forward(s0, masks, lengths, arch_weights, w_stack, b_stack, STEPS)
    jax.block_until_ready(states[-1])

    assert len(states) == STEPS + 1
    assert states[-1].shape == (B * L, D)

    # Correctness check against a pure-JAX reference (same bf16 matmul inputs).
    ref_states = cell_reference(s0, masks, arch_weights, w_stack, b_stack, STEPS)
    for got, want in zip(states[1:], ref_states[1:]):
        err = jnp.max(jnp.abs(got - want))
        assert err < 5e-2, f"max abs error {err}"

    print("KERNEL_OK")
</pallas_src>

<mosaic_0001>
module attributes {stable_mosaic.version = 11 : i64} {
  func.func @_cell_kernel(%arg0: i32, %arg1: memref<6x4xf32, #tpu.memory_space<smem>>, %arg2: memref<32x128xf32, #tpu.memory_space<vmem>>, %arg3: memref<32x1xf32, #tpu.memory_space<vmem>>, %arg4: memref<6x128x256xbf16, #tpu.memory_space<vmem>>, %arg5: memref<6x1x256xf32, #tpu.memory_space<vmem>>, %arg6: memref<3x32x128xf32, #tpu.memory_space<vmem>>) attributes {dimension_semantics = [#tpu.dimension_semantics<parallel>], iteration_bounds = array<i64: 1>, scalar_prefetch = 0 : i64, scratch_operands = 0 : i64, tpu.core_type = #tpu.core_type<tc>, window_params = [{transform_indices = @transform_0, window_bounds = array<i64: 6, 4>}, {transform_indices = @transform_1, window_bounds = array<i64: 32, 128>}, {transform_indices = @transform_2, window_bounds = array<i64: 32, 1>}, {pipeline_mode = #tpu.pipeline_mode<synchronous>, transform_indices = @transform_3, window_bounds = array<i64: 6, 128, 256>}, {pipeline_mode = #tpu.pipeline_mode<synchronous>, transform_indices = @transform_4, window_bounds = array<i64: 6, 1, 256>}, {transform_indices = @transform_5, window_bounds = array<i64: 3, 32, 128>}]} {
    %c0 = arith.constant 0 : index
    %c0_0 = arith.constant 0 : index
    %0 = vector.load %arg2[%c0, %c0_0] : memref<32x128xf32, #tpu.memory_space<vmem>>, vector<32x128xf32>
    %c0_1 = arith.constant 0 : index
    %c0_2 = arith.constant 0 : index
    %1 = vector.load %arg3[%c0_1, %c0_2] : memref<32x1xf32, #tpu.memory_space<vmem>>, vector<32x1xf32>
    %2 = arith.truncf %0 : vector<32x128xf32> to vector<32x128xbf16>
    %c0_3 = arith.constant 0 : index
    %c0_4 = arith.constant 0 : index
    %c0_5 = arith.constant 0 : index
    %3 = vector.load %arg4[%c0_3, %c0_4, %c0_5] : memref<6x128x256xbf16, #tpu.memory_space<vmem>>, vector<1x128x256xbf16>
    %4 = vector.shape_cast %3 : vector<1x128x256xbf16> to vector<128x256xbf16>
    %cst = arith.constant dense<0.000000e+00> : vector<32x256xf32>
    %5 = tpu.matmul %2, %4, %cst {dimension_numbers = #tpu.dot_dimension_numbers<[1], [0], [0], [1], [0, 0, 1, 1], [], []>} : vector<32x128xbf16>, vector<128x256xbf16>, vector<32x256xf32> -> vector<32x256xf32>
    %c0_6 = arith.constant 0 : index
    %c0_7 = arith.constant 0 : index
    %c0_8 = arith.constant 0 : index
    %6 = vector.load %arg5[%c0_6, %c0_7, %c0_8] : memref<6x1x256xf32, #tpu.memory_space<vmem>>, vector<1x1x256xf32>
    %7 = vector.shape_cast %6 : vector<1x1x256xf32> to vector<1x256xf32>
    %8 = vector.broadcast %7 : vector<1x256xf32> to vector<32x256xf32>
    %9 = arith.addf %5, %8 : vector<32x256xf32>
    %10 = vector.extract_strided_slice %9 {offsets = [0, 0], sizes = [32, 128], strides = [1, 1]} : vector<32x256xf32> to vector<32x128xf32>
    %cst_9 = arith.constant 0.000000e+00 : f32
    %11 = vector.broadcast %cst_9 : f32 to vector<32x128xf32>
    %12 = arith.maximumf %10, %11 : vector<32x128xf32>
    %13 = vector.extract_strided_slice %9 {offsets = [0, 128], sizes = [32, 128], strides = [1, 1]} : vector<32x256xf32> to vector<32x128xf32>
    %14 = math.tanh %13 : vector<32x128xf32>
    %c0_10 = arith.constant 0 : index
    %c1 = arith.constant 1 : index
    %15 = memref.load %arg1[%c0_10, %c1] : memref<6x4xf32, #tpu.memory_space<smem>>
    %16 = vector.broadcast %15 : f32 to vector<32x128xf32>
    %17 = arith.mulf %16, %0 : vector<32x128xf32>
    %c0_11 = arith.constant 0 : index
    %c2 = arith.constant 2 : index
    %18 = memref.load %arg1[%c0_11, %c2] : memref<6x4xf32, #tpu.memory_space<smem>>
    %19 = vector.broadcast %18 : f32 to vector<32x128xf32>
    %20 = arith.mulf %19, %12 : vector<32x128xf32>
    %21 = arith.addf %17, %20 : vector<32x128xf32>
    %c0_12 = arith.constant 0 : index
    %c3 = arith.constant 3 : index
    %22 = memref.load %arg1[%c0_12, %c3] : memref<6x4xf32, #tpu.memory_space<smem>>
    %23 = vector.broadcast %22 : f32 to vector<32x128xf32>
    %24 = arith.mulf %23, %14 : vector<32x128xf32>
    %25 = arith.addf %21, %24 : vector<32x128xf32>
    %26 = vector.broadcast %1 : vector<32x1xf32> to vector<32x128xf32>
    %27 = arith.mulf %25, %26 : vector<32x128xf32>
    %c0_13 = arith.constant 0 : index
    %c0_14 = arith.constant 0 : index
    %c0_15 = arith.constant 0 : index
    %28 = vector.load %arg6[%c0_13, %c0_14, %c0_15] : memref<3x32x128xf32, #tpu.memory_space<vmem>>, vector<1x32x128xf32>
    %29 = vector.shape_cast %28 : vector<1x32x128xf32> to vector<32x128xf32>
    %30 = vector.shape_cast %27 : vector<32x128xf32> to vector<1x32x128xf32>
    tpu.vector_store %arg6[%c0_13, %c0_14, %c0_15], %30 {strides = array<i32>} : memref<3x32x128xf32, #tpu.memory_space<vmem>>, vector<1x32x128xf32>,
    %31 = arith.truncf %0 : vector<32x128xf32> to vector<32x128xbf16>
    %c1_16 = arith.constant 1 : index
    %c0_17 = arith.constant 0 : index
    %c0_18 = arith.constant 0 : index
    %32 = vector.load %arg4[%c1_16, %c0_17, %c0_18] : memref<6x128x256xbf16, #tpu.memory_space<vmem>>, vector<1x128x256xbf16>
    %33 = vector.shape_cast %32 : vector<1x128x256xbf16> to vector<128x256xbf16>
    %cst_19 = arith.constant dense<0.000000e+00> : vector<32x256xf32>
    %34 = tpu.matmul %31, %33, %cst_19 {dimension_numbers = #tpu.dot_dimension_numbers<[1], [0], [0], [1], [0, 0, 1, 1], [], []>} : vector<32x128xbf16>, vector<128x256xbf16>, vector<32x256xf32> -> vector<32x256xf32>
    %c1_20 = arith.constant 1 : index
    %c0_21 = arith.constant 0 : index
    %c0_22 = arith.constant 0 : index
    %35 = vector.load %arg5[%c1_20, %c0_21, %c0_22] : memref<6x1x256xf32, #tpu.memory_space<vmem>>, vector<1x1x256xf32>
    %36 = vector.shape_cast %35 : vector<1x1x256xf32> to vector<1x256xf32>
    %37 = vector.broadcast %36 : vector<1x256xf32> to vector<32x256xf32>
    %38 = arith.addf %34, %37 : vector<32x256xf32>
    %39 = vector.extract_strided_slice %38 {offsets = [0, 0], sizes = [32, 128], strides = [1, 1]} : vector<32x256xf32> to vector<32x128xf32>
    %cst_23 = arith.constant 0.000000e+00 : f32
    %40 = vector.broadcast %cst_23 : f32 to vector<32x128xf32>
    %41 = arith.maximumf %39, %40 : vector<32x128xf32>
    %42 = vector.extract_strided_slice %38 {offsets = [0, 128], sizes = [32, 128], strides = [1, 1]} : vector<32x256xf32> to vector<32x128xf32>
    %43 = math.tanh %42 : vector<32x128xf32>
    %c1_24 = arith.constant 1 : index
    %c1_25 = arith.constant 1 : index
    %44 = memref.load %arg1[%c1_24, %c1_25] : memref<6x4xf32, #tpu.memory_space<smem>>
    %45 = vector.broadcast %44 : f32 to vector<32x128xf32>
    %46 = arith.mulf %45, %0 : vector<32x128xf32>
    %c1_26 = arith.constant 1 : index
    %c2_27 = arith.constant 2 : index
    %47 = memref.load %arg1[%c1_26, %c2_27] : memref<6x4xf32, #tpu.memory_space<smem>>
    %48 = vector.broadcast %47 : f32 to vector<32x128xf32>
    %49 = arith.mulf %48, %41 : vector<32x128xf32>
    %50 = arith.addf %46, %49 : vector<32x128xf32>
    %c1_28 = arith.constant 1 : index
    %c3_29 = arith.constant 3 : index
    %51 = memref.load %arg1[%c1_28, %c3_29] : memref<6x4xf32, #tpu.memory_space<smem>>
    %52 = vector.broadcast %51 : f32 to vector<32x128xf32>
    %53 = arith.mulf %52, %43 : vector<32x128xf32>
    %54 = arith.addf %50, %53 : vector<32x128xf32>
    %55 = vector.broadcast %1 : vector<32x1xf32> to vector<32x128xf32>
    %56 = arith.mulf %54, %55 : vector<32x128xf32>
    %57 = arith.truncf %27 : vector<32x128xf32> to vector<32x128xbf16>
    %c2_30 = arith.constant 2 : index
    %c0_31 = arith.constant 0 : index
    %c0_32 = arith.constant 0 : index
    %58 = vector.load %arg4[%c2_30, %c0_31, %c0_32] : memref<6x128x256xbf16, #tpu.memory_space<vmem>>, vector<1x128x256xbf16>
    %59 = vector.shape_cast %58 : vector<1x128x256xbf16> to vector<128x256xbf16>
    %cst_33 = arith.constant dense<0.000000e+00> : vector<32x256xf32>
    %60 = tpu.matmul %57, %59, %cst_33 {dimension_numbers = #tpu.dot_dimension_numbers<[1], [0], [0], [1], [0, 0, 1, 1], [], []>} : vector<32x128xbf16>, vector<128x256xbf16>, vector<32x256xf32> -> vector<32x256xf32>
    %c2_34 = arith.constant 2 : index
    %c0_35 = arith.constant 0 : index
    %c0_36 = arith.constant 0 : index
    %61 = vector.load %arg5[%c2_34, %c0_35, %c0_36] : memref<6x1x256xf32, #tpu.memory_space<vmem>>, vector<1x1x256xf32>
    %62 = vector.shape_cast %61 : vector<1x1x256xf32> to vector<1x256xf32>
    %63 = vector.broadcast %62 : vector<1x256xf32> to vector<32x256xf32>
    %64 = arith.addf %60, %63 : vector<32x256xf32>
    %65 = vector.extract_strided_slice %64 {offsets = [0, 0], sizes = [32, 128], strides = [1, 1]} : vector<32x256xf32> to vector<32x128xf32>
    %cst_37 = arith.constant 0.000000e+00 : f32
    %66 = vector.broadcast %cst_37 : f32 to vector<32x128xf32>
    %67 = arith.maximumf %65, %66 : vector<32x128xf32>
    %68 = vector.extract_strided_slice %64 {offsets = [0, 128], sizes = [32, 128], strides = [1, 1]} : vector<32x256xf32> to vector<32x128xf32>
    %69 = math.tanh %68 : vector<32x128xf32>
    %c2_38 = arith.constant 2 : index
    %c1_39 = arith.constant 1 : index
    %70 = memref.load %arg1[%c2_38, %c1_39] : memref<6x4xf32, #tpu.memory_space<smem>>
    %71 = vector.broadcast %70 : f32 to vector<32x128xf32>
    %72 = arith.mulf %71, %27 : vector<32x128xf32>
    %c2_40 = arith.constant 2 : index
    %c2_41 = arith.constant 2 : index
    %73 = memref.load %arg1[%c2_40, %c2_41] : memref<6x4xf32, #tpu.memory_space<smem>>
    %74 = vector.broadcast %73 : f32 to vector<32x128xf32>
    %75 = arith.mulf %74, %67 : vector<32x128xf32>
    %76 = arith.addf %72, %75 : vector<32x128xf32>
    %c2_42 = arith.constant 2 : index
    %c3_43 = arith.constant 3 : index
    %77 = memref.load %arg1[%c2_42, %c3_43] : memref<6x4xf32, #tpu.memory_space<smem>>
    %78 = vector.broadcast %77 : f32 to vector<32x128xf32>
    %79 = arith.mulf %78, %69 : vector<32x128xf32>
    %80 = arith.addf %76, %79 : vector<32x128xf32>
    %81 = vector.broadcast %1 : vector<32x1xf32> to vector<32x128xf32>
    %82 = arith.mulf %80, %81 : vector<32x128xf32>
    %83 = arith.addf %56, %82 : vector<32x128xf32>
    %c1_44 = arith.constant 1 : index
    %c0_45 = arith.constant 0 : index
    %c0_46 = arith.constant 0 : index
    %84 = vector.load %arg6[%c1_44, %c0_45, %c0_46] : memref<3x32x128xf32, #tpu.memory_space<vmem>>, vector<1x32x128xf32>
    %85 = vector.shape_cast %84 : vector<1x32x128xf32> to vector<32x128xf32>
    %86 = vector.shape_cast %83 : vector<32x128xf32> to vector<1x32x128xf32>
    tpu.vector_store %arg6[%c1_44, %c0_45, %c0_46], %86 {strides = array<i32>} : memref<3x32x128xf32, #tpu.memory_space<vmem>>, vector<1x32x128xf32>,
    %87 = arith.truncf %0 : vector<32x128xf32> to vector<32x128xbf16>
    %c3_47 = arith.constant 3 : index
    %c0_48 = arith.constant 0 : index
    %c0_49 = arith.constant 0 : index
    %88 = vector.load %arg4[%c3_47, %c0_48, %c0_49] : memref<6x128x256xbf16, #tpu.memory_space<vmem>>, vector<1x128x256xbf16>
    %89 = vector.shape_cast %88 : vector<1x128x256xbf16> to vector<128x256xbf16>
    %cst_50 = arith.constant dense<0.000000e+00> : vector<32x256xf32>
    %90 = tpu.matmul %87, %89, %cst_50 {dimension_numbers = #tpu.dot_dimension_numbers<[1], [0], [0], [1], [0, 0, 1, 1], [], []>} : vector<32x128xbf16>, vector<128x256xbf16>, vector<32x256xf32> -> vector<32x256xf32>
    %c3_51 = arith.constant 3 : index
    %c0_52 = arith.constant 0 : index
    %c0_53 = arith.constant 0 : index
    %91 = vector.load %arg5[%c3_51, %c0_52, %c0_53] : memref<6x1x256xf32, #tpu.memory_space<vmem>>, vector<1x1x256xf32>
    %92 = vector.shape_cast %91 : vector<1x1x256xf32> to vector<1x256xf32>
    %93 = vector.broadcast %92 : vector<1x256xf32> to vector<32x256xf32>
    %94 = arith.addf %90, %93 : vector<32x256xf32>
    %95 = vector.extract_strided_slice %94 {offsets = [0, 0], sizes = [32, 128], strides = [1, 1]} : vector<32x256xf32> to vector<32x128xf32>
    %cst_54 = arith.constant 0.000000e+00 : f32
    %96 = vector.broadcast %cst_54 : f32 to vector<32x128xf32>
    %97 = arith.maximumf %95, %96 : vector<32x128xf32>
    %98 = vector.extract_strided_slice %94 {offsets = [0, 128], sizes = [32, 128], strides = [1, 1]} : vector<32x256xf32> to vector<32x128xf32>
    %99 = math.tanh %98 : vector<32x128xf32>
    %c3_55 = arith.constant 3 : index
    %c1_56 = arith.constant 1 : index
    %100 = memref.load %arg1[%c3_55, %c1_56] : memref<6x4xf32, #tpu.memory_space<smem>>
    %101 = vector.broadcast %100 : f32 to vector<32x128xf32>
    %102 = arith.mulf %101, %0 : vector<32x128xf32>
    %c3_57 = arith.constant 3 : index
    %c2_58 = arith.constant 2 : index
    %103 = memref.load %arg1[%c3_57, %c2_58] : memref<6x4xf32, #tpu.memory_space<smem>>
    %104 = vector.broadcast %103 : f32 to vector<32x128xf32>
    %105 = arith.mulf %104, %97 : vector<32x128xf32>
    %106 = arith.addf %102, %105 : vector<32x128xf32>
    %c3_59 = arith.constant 3 : index
    %c3_60 = arith.constant 3 : index
    %107 = memref.load %arg1[%c3_59, %c3_60] : memref<6x4xf32, #tpu.memory_space<smem>>
    %108 = vector.broadcast %107 : f32 to vector<32x128xf32>
    %109 = arith.mulf %108, %99 : vector<32x128xf32>
    %110 = arith.addf %106, %109 : vector<32x128xf32>
    %111 = vector.broadcast %1 : vector<32x1xf32> to vector<32x128xf32>
    %112 = arith.mulf %110, %111 : vector<32x128xf32>
    %113 = arith.truncf %27 : vector<32x128xf32> to vector<32x128xbf16>
    %c4 = arith.constant 4 : index
    %c0_61 = arith.constant 0 : index
    %c0_62 = arith.constant 0 : index
    %114 = vector.load %arg4[%c4, %c0_61, %c0_62] : memref<6x128x256xbf16, #tpu.memory_space<vmem>>, vector<1x128x256xbf16>
    %115 = vector.shape_cast %114 : vector<1x128x256xbf16> to vector<128x256xbf16>
    %cst_63 = arith.constant dense<0.000000e+00> : vector<32x256xf32>
    %116 = tpu.matmul %113, %115, %cst_63 {dimension_numbers = #tpu.dot_dimension_numbers<[1], [0], [0], [1], [0, 0, 1, 1], [], []>} : vector<32x128xbf16>, vector<128x256xbf16>, vector<32x256xf32> -> vector<32x256xf32>
    %c4_64 = arith.constant 4 : index
    %c0_65 = arith.constant 0 : index
    %c0_66 = arith.constant 0 : index
    %117 = vector.load %arg5[%c4_64, %c0_65, %c0_66] : memref<6x1x256xf32, #tpu.memory_space<vmem>>, vector<1x1x256xf32>
    %118 = vector.shape_cast %117 : vector<1x1x256xf32> to vector<1x256xf32>
    %119 = vector.broadcast %118 : vector<1x256xf32> to vector<32x256xf32>
    %120 = arith.addf %116, %119 : vector<32x256xf32>
    %121 = vector.extract_strided_slice %120 {offsets = [0, 0], sizes = [32, 128], strides = [1, 1]} : vector<32x256xf32> to vector<32x128xf32>
    %cst_67 = arith.constant 0.000000e+00 : f32
    %122 = vector.broadcast %cst_67 : f32 to vector<32x128xf32>
    %123 = arith.maximumf %121, %122 : vector<32x128xf32>
    %124 = vector.extract_strided_slice %120 {offsets = [0, 128], sizes = [32, 128], strides = [1, 1]} : vector<32x256xf32> to vector<32x128xf32>
    %125 = math.tanh %124 : vector<32x128xf32>
    %c4_68 = arith.constant 4 : index
    %c1_69 = arith.constant 1 : index
    %126 = memref.load %arg1[%c4_68, %c1_69] : memref<6x4xf32, #tpu.memory_space<smem>>
    %127 = vector.broadcast %126 : f32 to vector<32x128xf32>
    %128 = arith.mulf %127, %27 : vector<32x128xf32>
    %c4_70 = arith.constant 4 : index
    %c2_71 = arith.constant 2 : index
    %129 = memref.load %arg1[%c4_70, %c2_71] : memref<6x4xf32, #tpu.memory_space<smem>>
    %130 = vector.broadcast %129 : f32 to vector<32x128xf32>
    %131 = arith.mulf %130, %123 : vector<32x128xf32>
    %132 = arith.addf %128, %131 : vector<32x128xf32>
    %c4_72 = arith.constant 4 : index
    %c3_73 = arith.constant 3 : index
    %133 = memref.load %arg1[%c4_72, %c3_73] : memref<6x4xf32, #tpu.memory_space<smem>>
    %134 = vector.broadcast %133 : f32 to vector<32x128xf32>
    %135 = arith.mulf %134, %125 : vector<32x128xf32>
    %136 = arith.addf %132, %135 : vector<32x128xf32>
    %137 = vector.broadcast %1 : vector<32x1xf32> to vector<32x128xf32>
    %138 = arith.mulf %136, %137 : vector<32x128xf32>
    %139 = arith.addf %112, %138 : vector<32x128xf32>
    %140 = arith.truncf %83 : vector<32x128xf32> to vector<32x128xbf16>
    %c5 = arith.constant 5 : index
    %c0_74 = arith.constant 0 : index
    %c0_75 = arith.constant 0 : index
    %141 = vector.load %arg4[%c5, %c0_74, %c0_75] : memref<6x128x256xbf16, #tpu.memory_space<vmem>>, vector<1x128x256xbf16>
    %142 = vector.shape_cast %141 : vector<1x128x256xbf16> to vector<128x256xbf16>
    %cst_76 = arith.constant dense<0.000000e+00> : vector<32x256xf32>
    %143 = tpu.matmul %140, %142, %cst_76 {dimension_numbers = #tpu.dot_dimension_numbers<[1], [0], [0], [1], [0, 0, 1, 1], [], []>} : vector<32x128xbf16>, vector<128x256xbf16>, vector<32x256xf32> -> vector<32x256xf32>
    %c5_77 = arith.constant 5 : index
    %c0_78 = arith.constant 0 : index
    %c0_79 = arith.constant 0 : index
    %144 = vector.load %arg5[%c5_77, %c0_78, %c0_79] : memref<6x1x256xf32, #tpu.memory_space<vmem>>, vector<1x1x256xf32>
    %145 = vector.shape_cast %144 : vector<1x1x256xf32> to vector<1x256xf32>
    %146 = vector.broadcast %145 : vector<1x256xf32> to vector<32x256xf32>
    %147 = arith.addf %143, %146 : vector<32x256xf32>
    %148 = vector.extract_strided_slice %147 {offsets = [0, 0], sizes = [32, 128], strides = [1, 1]} : vector<32x256xf32> to vector<32x128xf32>
    %cst_80 = arith.constant 0.000000e+00 : f32
    %149 = vector.broadcast %cst_80 : f32 to vector<32x128xf32>
    %150 = arith.maximumf %148, %149 : vector<32x128xf32>
    %151 = vector.extract_strided_slice %147 {offsets = [0, 128], sizes = [32, 128], strides = [1, 1]} : vector<32x256xf32> to vector<32x128xf32>
    %152 = math.tanh %151 : vector<32x128xf32>
    %c5_81 = arith.constant 5 : index
    %c1_82 = arith.constant 1 : index
    %153 = memref.load %arg1[%c5_81, %c1_82] : memref<6x4xf32, #tpu.memory_space<smem>>
    %154 = vector.broadcast %153 : f32 to vector<32x128xf32>
    %155 = arith.mulf %154, %83 : vector<32x128xf32>
    %c5_83 = arith.constant 5 : index
    %c2_84 = arith.constant 2 : index
    %156 = memref.load %arg1[%c5_83, %c2_84] : memref<6x4xf32, #tpu.memory_space<smem>>
    %157 = vector.broadcast %156 : f32 to vector<32x128xf32>
    %158 = arith.mulf %157, %150 : vector<32x128xf32>
    %159 = arith.addf %155, %158 : vector<32x128xf32>
    %c5_85 = arith.constant 5 : index
    %c3_86 = arith.constant 3 : index
    %160 = memref.load %arg1[%c5_85, %c3_86] : memref<6x4xf32, #tpu.memory_space<smem>>
    %161 = vector.broadcast %160 : f32 to vector<32x128xf32>
    %162 = arith.mulf %161, %152 : vector<32x128xf32>
    %163 = arith.addf %159, %162 : vector<32x128xf32>
    %164 = vector.broadcast %1 : vector<32x1xf32> to vector<32x128xf32>
    %165 = arith.mulf %163, %164 : vector<32x128xf32>
    %166 = arith.addf %139, %165 : vector<32x128xf32>
    %c2_87 = arith.constant 2 : index
    %c0_88 = arith.constant 0 : index
    %c0_89 = arith.constant 0 : index
    %167 = vector.load %arg6[%c2_87, %c0_88, %c0_89] : memref<3x32x128xf32, #tpu.memory_space<vmem>>, vector<1x32x128xf32>
    %168 = vector.shape_cast %167 : vector<1x32x128xf32> to vector<32x128xf32>
    %169 = vector.shape_cast %166 : vector<32x128xf32> to vector<1x32x128xf32>
    tpu.vector_store %arg6[%c2_87, %c0_88, %c0_89], %169 {strides = array<i32>} : memref<3x32x128xf32, #tpu.memory_space<vmem>>, vector<1x32x128xf32>,
    return
  }
  func.func @transform_0(%arg0: i32) -> (i32, i32) {
    %c0_i32 = arith.constant 0 : i32
    %c0_i32_0 = arith.constant 0 : i32
    %c0_i32_1 = arith.constant 0 : i32
    return %c0_i32, %c0_i32_0 : i32, i32
  }
  func.func @transform_1(%arg0: i32) -> (i32, i32) {
    %c0_i32 = arith.constant 0 : i32
    %c0_i32_0 = arith.constant 0 : i32
    return %arg0, %c0_i32 : i32, i32
  }
  func.func @transform_2(%arg0: i32) -> (i32, i32) {
    %c0_i32 = arith.constant 0 : i32
    %c0_i32_0 = arith.constant 0 : i32
    return %arg0, %c0_i32 : i32, i32
  }
  func.func @transform_3(%arg0: i32) -> (i32, i32, i32) {
    %c0_i32 = arith.constant 0 : i32
    %c0_i32_0 = arith.constant 0 : i32
    %c0_i32_1 = arith.constant 0 : i32
    %c0_i32_2 = arith.constant 0 : i32
    return %c0_i32, %c0_i32_0, %c0_i32_1 : i32, i32, i32
  }
  func.func @transform_4(%arg0: i32) -> (i32, i32, i32) {
    %c0_i32 = arith.constant 0 : i32
    %c0_i32_0 = arith.constant 0 : i32
    %c0_i32_1 = arith.constant 0 : i32
    %c0_i32_2 = arith.constant 0 : i32
    return %c0_i32, %c0_i32_0, %c0_i32_1 : i32, i32, i32
  }
  func.func @transform_5(%arg0: i32) -> (i32, i32, i32) {
    %c0_i32 = arith.constant 0 : i32
    %c0_i32_0 = arith.constant 0 : i32
    %c0_i32_1 = arith.constant 0 : i32
    return %c0_i32, %arg0, %c0_i32_0 : i32, i32, i32
  }
}

</mosaic_0001>

<llo_original>
// kernel: tpu_custom_call.1
$region0: #{tpu_custom_call.1}
  #allocation0 [shape = 'u32[]', space=smem, size = 0x4, offset = 0x4, fixed_abs, tag = 'smem constant byte address 0x4 - core index']
  #allocation1 [shape = 'u32[144,128]{1,0:T(1,128)}', space=vmem, size = 0x12000, scoped, tag = 'internal scratch']
  %s0 = inlined_call_operand.vmem [shape: f32[6,4], index: 0, kind: input, shape index: {}]
  %s1 = inlined_call_operand.vmem [shape: f32[32,128], index: 1, kind: input, shape index: {}]
  %s2 = inlined_call_operand.vmem [shape: f32[32,1], index: 2, kind: input, shape index: {}]
  %s3 = inlined_call_operand.hbm [shape: bf16[6,128,256], index: 3, kind: input, shape index: {}]
  %s4 = inlined_call_operand.vmem [shape: f32[6,1,256], index: 4, kind: input, shape index: {}]
  %s5 = inlined_call_operand.hbm [shape: f32[3,32,128], index: 5, kind: output, shape index: {}]
  %s6 = sld [smem:[#allocation0]]
  $region38: #{tpu_custom_call.1} parent=0
    _
  %s8 = ssub.s32 1, %s6
  %s9 = scalar_select 0, %s8, %s6
  $region1: #{tpu_custom_call.1} parent=0
    #allocation2 [shape = 'u8[4096]{0}', space=smem, size = 0x1000, scoped, tag = 'input window, operand 0, single buffered']
    #allocation3 [shape = 's32[1]{0}', space=sflag, size = 0x4, scoped, tag = 'scoped memory for tpu_custom_call.1']
    #allocation4 [shape = 's32[1]{0}', space=sflag, size = 0x4, scoped, tag = 'scoped memory for tpu_custom_call.1']
    #allocation5 [shape = 's32[1]{0}', space=sflag, size = 0x4, scoped, tag = 'scoped memory for tpu_custom_call.1']
    #allocation6 [shape = 'u8[393216]{0}', space=vmem, size = 0x60000, scoped, tag = 'input window, operand 3, single buffered']
    #allocation7 [shape = 'u8[49152]{0}', space=vmem, size = 0xc000, scoped, tag = 'output window, operand 0, single buffered']
    %10 = vsyncpa [#allocation5], 0
    %11 = vsyncpa [#allocation3], 0
    %12 = vsyncpa [#allocation4], 0
    // Predicated region
    $region2: #{tpu_custom_call.1} parent=1 // pred_check
      _
    $region3: #{tpu_custom_call.1} parent=1 // pred_check_branch
      %14 = sbr.rel (0) target = $region5
    $region4: #{tpu_custom_call.1} parent=1 // pred_region
      %s16 = ssub.s32 128, 128
      %17 = vsyncadd [#allocation5], %s16
      %s19 = sshll.u32 %s0, 4
      %s20 = int_to_ptr.vmem [resolvable:$true] %s19
      %22 = dma.vmem_to_smem %s20, 128, [#allocation2], [#allocation5]
    $region5: #{tpu_custom_call.1} parent=1 // pred_fallthru
      _
    // Predicated region
    $region6: #{tpu_custom_call.1} parent=1 // pred_check
      _
    $region7: #{tpu_custom_call.1} parent=1 // pred_check_branch
      %24 = sbr.rel (0) target = $region9
    $region8: #{tpu_custom_call.1} parent=1 // pred_region
      _
    $region9: #{tpu_custom_call.1} parent=1 // pred_fallthru
      _
    // Predicated region
    $region10: #{tpu_custom_call.1} parent=1 // pred_check
      _
    $region11: #{tpu_custom_call.1} parent=1 // pred_check_branch
      %26 = sbr.rel (0) target = $region13
    $region12: #{tpu_custom_call.1} parent=1 // pred_region
      _
    $region13: #{tpu_custom_call.1} parent=1 // pred_fallthru
      _
    // Predicated region
    $region14: #{tpu_custom_call.1} parent=1 // pred_check
      _
    $region15: #{tpu_custom_call.1} parent=1 // pred_check_branch
      %28 = sbr.rel (0) target = $region17
    $region16: #{tpu_custom_call.1} parent=1 // pred_region
      %s30 = ssub.s32 12288, 12288
      %31 = vsyncadd [#allocation3], %s30
      %s32 = sshll.u32 [#allocation6], 4
      %s33 = int_to_ptr.vmem [resolvable:$true] %s32
      %38 = dma.hbm_to_vmem [thread:$0]  %s3, 12288, %s33, [#allocation3], 128, 128, 8
    $region17: #{tpu_custom_call.1} parent=1 // pred_fallthru
      _
    // Predicated region
    $region18: #{tpu_custom_call.1} parent=1 // pred_check
      _
    $region19: #{tpu_custom_call.1} parent=1 // pred_check_branch
      %40 = sbr.rel (0) target = $region21
    $region20: #{tpu_custom_call.1} parent=1 // pred_region
      _
    $region21: #{tpu_custom_call.1} parent=1 // pred_fallthru
      _
    // Predicated region
    $region22: #{tpu_custom_call.1} parent=1 // pred_check
      _
    $region23: #{tpu_custom_call.1} parent=1 // pred_check_branch
      %42 = sbr.rel (0) target = $region25
    $region24: #{tpu_custom_call.1} parent=1 // pred_region
      %43 = dma.done [#allocation5], 128
    $region25: #{tpu_custom_call.1} parent=1 // pred_fallthru
      _
    // Predicated region
    $region26: #{tpu_custom_call.1} parent=1 // pred_check
      _
    $region27: #{tpu_custom_call.1} parent=1 // pred_check_branch
      %45 = sbr.rel (0) target = $region29
    $region28: #{tpu_custom_call.1} parent=1 // pred_region
      %46 = dma.done [#allocation3], 12288
    $region29: #{tpu_custom_call.1} parent=1 // pred_fallthru
      _
    %47 = sfence
    %v49 = vld [vmem:[%s1] sm:$0xff]
    %v50 = vld [vmem:[%s1 + $0x8] sm:$0xff]
    %v51 = vld [vmem:[%s1 + $0x10] sm:$0xff]
    %v52 = vld [vmem:[%s1 + $0x18] sm:$0xff]
    %v53 = vld [vmem:[%s2] sm:$0xff]
    %v54 = vld [vmem:[%s2 + $0x8] sm:$0xff]
    %v55 = vld [vmem:[%s2 + $0x10] sm:$0xff]
    %v56 = vld [vmem:[%s2 + $0x18] sm:$0xff]
    %v57 = vpack.c.bf16 %v50, %v49
    %v58 = vpack.c.bf16 %v52, %v51
    %v59 = vld [vmem:[#allocation6] sm:$0xff]
    %v60 = vld [vmem:[#allocation6 + $0x8] sm:$0xff]
    %v61 = vld [vmem:[#allocation6 + $0x10] sm:$0xff]
    %v62 = vld [vmem:[#allocation6 + $0x18] sm:$0xff]
    %v63 = vld [vmem:[#allocation6 + $0x20] sm:$0xff]
    %v64 = vld [vmem:[#allocation6 + $0x28] sm:$0xff]
    %v65 = vld [vmem:[#allocation6 + $0x30] sm:$0xff]
    %v66 = vld [vmem:[#allocation6 + $0x38] sm:$0xff]
    %v67 = vld [vmem:[#allocation6 + $0x40] sm:$0xff]
    %v68 = vld [vmem:[#allocation6 + $0x48] sm:$0xff]
    %v69 = vld [vmem:[#allocation6 + $0x50] sm:$0xff]
    %v70 = vld [vmem:[#allocation6 + $0x58] sm:$0xff]
    %v71 = vld [vmem:[#allocation6 + $0x60] sm:$0xff]
    %v72 = vld [vmem:[#allocation6 + $0x68] sm:$0xff]
    %v73 = vld [vmem:[#allocation6 + $0x70] sm:$0xff]
    %v74 = vld [vmem:[#allocation6 + $0x78] sm:$0xff]
    %v75 = vld [vmem:[%s4] sm:$0x3]
    %v77 = vlaneseq
    %v78 = vshrl.u32 %v77, 7
    %v79 = vsub.s32 0, %v78
    %v80 = vrot.slane %v75, %v79
    %v81 = vlaneseq
    %v82 = vshrl.u32 %v81, 7
    %v83 = vsub.s32 1, %v82
    %v84 = vrot.slane %v75, %v83
    %v103 = vunpack.c.l.b16 %v59
    %v104 = vunpack.c.h.b16 %v59
    %v105 = vunpack.c.l.b16 %v60
    %v106 = vunpack.c.h.b16 %v60
    %v107 = vunpack.c.l.b16 %v61
    %v108 = vunpack.c.h.b16 %v61
    %v109 = vunpack.c.l.b16 %v62
    %v110 = vunpack.c.h.b16 %v62
    %v111 = vunpack.c.l.b16 %v63
    %v112 = vunpack.c.h.b16 %v63
    %v113 = vunpack.c.l.b16 %v64
    %v114 = vunpack.c.h.b16 %v64
    %v115 = vunpack.c.l.b16 %v65
    %v116 = vunpack.c.h.b16 %v65
    %v117 = vunpack.c.l.b16 %v66
    %v118 = vunpack.c.h.b16 %v66
    %v119 = vunpack.c.l.b16 %v67
    %v120 = vunpack.c.h.b16 %v67
    %v121 = vunpack.c.l.b16 %v68
    %v122 = vunpack.c.h.b16 %v68
    %v123 = vunpack.c.l.b16 %v69
    %v124 = vunpack.c.h.b16 %v69
    %v125 = vunpack.c.l.b16 %v70
    %v126 = vunpack.c.h.b16 %v70
    %v127 = vunpack.c.l.b16 %v71
    %v128 = vunpack.c.h.b16 %v71
    %v129 = vunpack.c.l.b16 %v72
    %v130 = vunpack.c.h.b16 %v72
    %v131 = vunpack.c.l.b16 %v73
    %v132 = vunpack.c.h.b16 %v73
    %v133 = vunpack.c.l.b16 %v74
    %v134 = vunpack.c.h.b16 %v74
    %v135 = vpack.c.b16 %v105, %v103
    %v136 = vpack.c.b16 %v106, %v104
    %v137 = vpack.c.b16 %v109, %v107
    %v138 = vpack.c.b16 %v110, %v108
    %v139 = vpack.c.b16 %v113, %v111
    %v140 = vpack.c.b16 %v114, %v112
    %v141 = vpack.c.b16 %v117, %v115
    %v142 = vpack.c.b16 %v118, %v116
    %v143 = vpack.c.b16 %v121, %v119
    %v144 = vpack.c.b16 %v122, %v120
    %v145 = vpack.c.b16 %v125, %v123
    %v146 = vpack.c.b16 %v126, %v124
    %v147 = vpack.c.b16 %v129, %v127
    %v148 = vpack.c.b16 %v130, %v128
    %v149 = vpack.c.b16 %v133, %v131
    %v150 = vpack.c.b16 %v134, %v132
    %167 = vmatprep.subr.bf16.mxu0 %v136
    %168 = vmatpush1.bf16.msra.mxu0 %v135
    %169 = vmatprep.subr.bf16.mxu0 %v138
    %170 = vmatpush1.bf16.msra.mxu0 %v137
    %171 = vmatprep.subr.bf16.mxu0 %v140
    %172 = vmatpush1.bf16.msra.mxu0 %v139
    %173 = vmatprep.subr.bf16.mxu0 %v142
    %174 = vmatpush1.bf16.msra.mxu0 %v141
    %175 = vmatprep.subr.bf16.mxu0 %v144
    %176 = vmatpush1.bf16.msra.mxu0 %v143
    %177 = vmatprep.subr.bf16.mxu0 %v146
    %178 = vmatpush1.bf16.msra.mxu0 %v145
    %179 = vmatprep.subr.bf16.mxu0 %v148
    %180 = vmatpush1.bf16.msra.mxu0 %v147
    %181 = vmatprep.subr.bf16.mxu0 %v150
    %182 = vmatpush1.bf16.msra.mxu0 %v149
    %183 = vmatprep.subr.bf16.mxu0 0
    %184 = vmatpush1.bf16.msra.mxu0 0
    %185 = vmatprep.subr.bf16.mxu0 0
    %186 = vmatpush1.bf16.msra.mxu0 0
    %187 = vmatprep.subr.bf16.mxu0 0
    %188 = vmatpush1.bf16.msra.mxu0 0
    %189 = vmatprep.subr.bf16.mxu0 0
    %190 = vmatpush1.bf16.msra.mxu0 0
    %191 = vmatprep.subr.bf16.mxu0 0
    %192 = vmatpush1.bf16.msra.mxu0 0
    %193 = vmatprep.subr.bf16.mxu0 0
    %194 = vmatpush1.bf16.msra.mxu0 0
    %195 = vmatprep.subr.bf16.mxu0 0
    %196 = vmatpush1.bf16.msra.mxu0 0
    %197 = vmatprep.subr.bf16.mxu0 0
    %198 = vmatpush1.bf16.msra.mxu0 0
    %199 = vmatprep.mubr.bf16.mxu0 0
    %200 = vmatmul.mubr.bf16.gmra.mrb[0].mxu0 %v57
    %v201 = vpop.f32.mrb[0].mxu0
    %v202 = vadd.f32 %v80, %v201
    %v203 = vpop.f32.mrb[0].mxu0
    %v204 = vadd.f32 %v84, %v203
    %v205 = vpop.f32.mrb[0].mxu0
    %v206 = vadd.f32 %v80, %v205
    %v207 = vpop.f32.mrb[0].mxu0
    %v208 = vadd.f32 %v84, %v207
    %209 = vmatprep.mubr.bf16.mxu0 0
    %210 = vmatmul.mubr.bf16.gmra.mrb[0].mxu0 %v58
    %v211 = vpop.f32.mrb[0].mxu0
    %v212 = vadd.f32 %v80, %v211
    %v213 = vpop.f32.mrb[0].mxu0
    %v214 = vadd.f32 %v84, %v213
    %v215 = vpop.f32.mrb[0].mxu0
    %v216 = vadd.f32 %v80, %v215
    %v217 = vpop.f32.mrb[0].mxu0
    %v218 = vadd.f32 %v84, %v217
    %219 = vdwg.mxu0
    %v220 = vmax.f32 %v202, 0.0
    %v221 = vmax.f32 %v206, 0.0
    %v222 = vmax.f32 %v212, 0.0
    %v223 = vmax.f32 %v216, 0.0
    %v224 = vtanh.pop %v204
    %v225 = vtanh.pop %v208
    %v226 = vtanh.pop %v214
    %v227 = vtanh.pop %v218
    %s228 = sld [smem:[#allocation2 + $0x1]]
    %v229 = vstv %s228
    %v230 = vmul.f32 %v229, %v49
    %v231 = vmul.f32 %v229, %v50
    %v232 = vmul.f32 %v229, %v51
    %v233 = vmul.f32 %v229, %v52
    %s234 = sld [smem:[#allocation2 + $0x2]]
    %v235 = vstv %s234
    %v236 = vmul.f32 %v235, %v220
    %v237 = vmul.f32 %v235, %v221
    %v238 = vmul.f32 %v235, %v222
    %v239 = vmul.f32 %v235, %v223
    %v240 = vadd.f32 %v230, %v236
    %v241 = vadd.f32 %v231, %v237
    %v242 = vadd.f32 %v232, %v238
    %v243 = vadd.f32 %v233, %v239
    %s244 = sld [smem:[#allocation2 + $0x3]]
    %v245 = vstv %s244
    %v246 = vmul.f32 %v245, %v224
    %v247 = vmul.f32 %v245, %v225
    %v248 = vmul.f32 %v245, %v226
    %v249 = vmul.f32 %v245, %v227
    %v250 = vadd.f32 %v240, %v246
    %v251 = vadd.f32 %v241, %v247
    %v252 = vadd.f32 %v242, %v248
    %v253 = vadd.f32 %v243, %v249
    %255 = vset.pattern.permute.xlu0 0
    %256 = vperm.xlu0 %255, %v53
    %v257 = vpop.permute.xlu0 %256
    %260 = vset.pattern.permute.xlu0 0
    %261 = vperm.xlu0 %260, %v54
    %v262 = vpop.permute.xlu0 %261
    %265 = vset.pattern.permute.xlu0 0
    %266 = vperm.xlu0 %265, %v55
    %v267 = vpop.permute.xlu0 %266
    %270 = vset.pattern.permute.xlu0 0
    %271 = vperm.xlu0 %270, %v56
    %v272 = vpop.permute.xlu0 %271
    %v274 = vmul.f32 %v250, %v257
    %v275 = vmul.f32 %v251, %v262
    %v276 = vmul.f32 %v252, %v267
    %v277 = vmul.f32 %v253, %v272
    %278 = vst [vmem:[#allocation7] sm:$0xff] %v274
    %279 = vst [vmem:[#allocation7 + $0x8] sm:$0xff] %v275
    %280 = vst [vmem:[#allocation7 + $0x10] sm:$0xff] %v276
    %281 = vst [vmem:[#allocation7 + $0x18] sm:$0xff] %v277
    %s282 = scalar_lea.vmem [#allocation6], 128
    %v283 = vld [vmem:[%s282] sm:$0xff]
    %v284 = vld [vmem:[%s282 + $0x8] sm:$0xff]
    %v285 = vld [vmem:[%s282 + $0x10] sm:$0xff]
    %v286 = vld [vmem:[%s282 + $0x18] sm:$0xff]
    %v287 = vld [vmem:[%s282 + $0x20] sm:$0xff]
    %v288 = vld [vmem:[%s282 + $0x28] sm:$0xff]
    %v289 = vld [vmem:[%s282 + $0x30] sm:$0xff]
    %v290 = vld [vmem:[%s282 + $0x38] sm:$0xff]
    %v291 = vld [vmem:[%s282 + $0x40] sm:$0xff]
    %v292 = vld [vmem:[%s282 + $0x48] sm:$0xff]
    %v293 = vld [vmem:[%s282 + $0x50] sm:$0xff]
    %v294 = vld [vmem:[%s282 + $0x58] sm:$0xff]
    %v295 = vld [vmem:[%s282 + $0x60] sm:$0xff]
    %v296 = vld [vmem:[%s282 + $0x68] sm:$0xff]
    %v297 = vld [vmem:[%s282 + $0x70] sm:$0xff]
    %v298 = vld [vmem:[%s282 + $0x78] sm:$0xff]
    %s299 = scalar_lea.vmem %s4, 2
    %v300 = vld [vmem:[%s299] sm:$0x3]
    %v302 = vlaneseq
    %v303 = vshrl.u32 %v302, 7
    %v304 = vsub.s32 0, %v303
    %v305 = vrot.slane %v300, %v304
    %v306 = vlaneseq
    %v307 = vshrl.u32 %v306, 7
    %v308 = vsub.s32 1, %v307
    %v309 = vrot.slane %v300, %v308
    %v328 = vunpack.c.l.b16 %v283
    %v329 = vunpack.c.h.b16 %v283
    %v330 = vunpack.c.l.b16 %v284
    %v331 = vunpack.c.h.b16 %v284
    %v332 = vunpack.c.l.b16 %v285
    %v333 = vunpack.c.h.b16 %v285
    %v334 = vunpack.c.l.b16 %v286
    %v335 = vunpack.c.h.b16 %v286
    %v336 = vunpack.c.l.b16 %v287
    %v337 = vunpack.c.h.b16 %v287
    %v338 = vunpack.c.l.b16 %v288
    %v339 = vunpack.c.h.b16 %v288
    %v340 = vunpack.c.l.b16 %v289
    %v341 = vunpack.c.h.b16 %v289
    %v342 = vunpack.c.l.b16 %v290
    %v343 = vunpack.c.h.b16 %v290
    %v344 = vunpack.c.l.b16 %v291
    %v345 = vunpack.c.h.b16 %v291
    %v346 = vunpack.c.l.b16 %v292
    %v347 = vunpack.c.h.b16 %v292
    %v348 = vunpack.c.l.b16 %v293
    %v349 = vunpack.c.h.b16 %v293
    %v350 = vunpack.c.l.b16 %v294
    %v351 = vunpack.c.h.b16 %v294
    %v352 = vunpack.c.l.b16 %v295
    %v353 = vunpack.c.h.b16 %v295
    %v354 = vunpack.c.l.b16 %v296
    %v355 = vunpack.c.h.b16 %v296
    %v356 = vunpack.c.l.b16 %v297
    %v357 = vunpack.c.h.b16 %v297
    %v358 = vunpack.c.l.b16 %v298
    %v359 = vunpack.c.h.b16 %v298
    %v360 = vpack.c.b16 %v330, %v328
    %v361 = vpack.c.b16 %v331, %v329
    %v362 = vpack.c.b16 %v334, %v332
    %v363 = vpack.c.b16 %v335, %v333
    %v364 = vpack.c.b16 %v338, %v336
    %v365 = vpack.c.b16 %v339, %v337
    %v366 = vpack.c.b16 %v342, %v340
    %v367 = vpack.c.b16 %v343, %v341
    %v368 = vpack.c.b16 %v346, %v344
    %v369 = vpack.c.b16 %v347, %v345
    %v370 = vpack.c.b16 %v350, %v348
    %v371 = vpack.c.b16 %v351, %v349
    %v372 = vpack.c.b16 %v354, %v352
    %v373 = vpack.c.b16 %v355, %v353
    %v374 = vpack.c.b16 %v358, %v356
    %v375 = vpack.c.b16 %v359, %v357
    %392 = vmatprep.subr.bf16.mxu0 %v361
    %393 = vmatpush1.bf16.msra.mxu0 %v360
    %394 = vmatprep.subr.bf16.mxu0 %v363
    %395 = vmatpush1.bf16.msra.mxu0 %v362
    %396 = vmatprep.subr.bf16.mxu0 %v365
    %397 = vmatpush1.bf16.msra.mxu0 %v364
    %398 = vmatprep.subr.bf16.mxu0 %v367
    %399 = vmatpush1.bf16.msra.mxu0 %v366
    %400 = vmatprep.subr.bf16.mxu0 %v369
    %401 = vmatpush1.bf16.msra.mxu0 %v368
    %402 = vmatprep.subr.bf16.mxu0 %v371
    %403 = vmatpush1.bf16.msra.mxu0 %v370
    %404 = vmatprep.subr.bf16.mxu0 %v373
    %405 = vmatpush1.bf16.msra.mxu0 %v372
    %406 = vmatprep.subr.bf16.mxu0 %v375
    %407 = vmatpush1.bf16.msra.mxu0 %v374
    %408 = vmatprep.subr.bf16.mxu0 0
    %409 = vmatpush1.bf16.msra.mxu0 0
    %410 = vmatprep.subr.bf16.mxu0 0
    %411 = vmatpush1.bf16.msra.mxu0 0
    %412 = vmatprep.subr.bf16.mxu0 0
    %413 = vmatpush1.bf16.msra.mxu0 0
    %414 = vmatprep.subr.bf16.mxu0 0
    %415 = vmatpush1.bf16.msra.mxu0 0
    %416 = vmatprep.subr.bf16.mxu0 0
    %417 = vmatpush1.bf16.msra.mxu0 0
    %418 = vmatprep.subr.bf16.mxu0 0
    %419 = vmatpush1.bf16.msra.mxu0 0
    %420 = vmatprep.subr.bf16.mxu0 0
    %421 = vmatpush1.bf16.msra.mxu0 0
    %422 = vmatprep.subr.bf16.mxu0 0
    %423 = vmatpush1.bf16.msra.mxu0 0
    %424 = vmatprep.mubr.bf16.mxu0 0
    %425 = vmatmul.mubr.bf16.gmra.mrb[0].mxu0 %v57
    %v426 = vpop.f32.mrb[0].mxu0
    %v427 = vadd.f32 %v305, %v426
    %v428 = vpop.f32.mrb[0].mxu0
    %v429 = vadd.f32 %v309, %v428
    %v430 = vpop.f32.mrb[0].mxu0
    %v431 = vadd.f32 %v305, %v430
    %v432 = vpop.f32.mrb[0].mxu0
    %v433 = vadd.f32 %v309, %v432
    %434 = vmatprep.mubr.bf16.mxu0 0
    %435 = vmatmul.mubr.bf16.gmra.mrb[0].mxu0 %v58
    %v436 = vpop.f32.mrb[0].mxu0
    %v437 = vadd.f32 %v305, %v436
    %v438 = vpop.f32.mrb[0].mxu0
    %v439 = vadd.f32 %v309, %v438
    %v440 = vpop.f32.mrb[0].mxu0
    %v441 = vadd.f32 %v305, %v440
    %v442 = vpop.f32.mrb[0].mxu0
    %v443 = vadd.f32 %v309, %v442
    %444 = vdwg.mxu0
    %v445 = vmax.f32 %v427, 0.0
    %v446 = vmax.f32 %v431, 0.0
    %v447 = vmax.f32 %v437, 0.0
    %v448 = vmax.f32 %v441, 0.0
    %v449 = vtanh.pop %v429
    %v450 = vtanh.pop %v433
    %v451 = vtanh.pop %v439
    %v452 = vtanh.pop %v443
    %s453 = sld [smem:[#allocation2 + $0x81]]
    %v454 = vstv %s453
    %v455 = vmul.f32 %v454, %v49
    %v456 = vmul.f32 %v454, %v50
    %v457 = vmul.f32 %v454, %v51
    %v458 = vmul.f32 %v454, %v52
    %s459 = sld [smem:[#allocation2 + $0x82]]
    %v460 = vstv %s459
    %v461 = vmul.f32 %v460, %v445
    %v462 = vmul.f32 %v460, %v446
    %v463 = vmul.f32 %v460, %v447
    %v464 = vmul.f32 %v460, %v448
    %v465 = vadd.f32 %v455, %v461
    %v466 = vadd.f32 %v456, %v462
    %v467 = vadd.f32 %v457, %v463
    %v468 = vadd.f32 %v458, %v464
    %s469 = sld [smem:[#allocation2 + $0x83]]
    %v470 = vstv %s469
    %v471 = vmul.f32 %v470, %v449
    %v472 = vmul.f32 %v470, %v450
    %v473 = vmul.f32 %v470, %v451
    %v474 = vmul.f32 %v470, %v452
    %v475 = vadd.f32 %v465, %v471
    %v476 = vadd.f32 %v466, %v472
    %v477 = vadd.f32 %v467, %v473
    %v478 = vadd.f32 %v468, %v474
    %v479 = vmul.f32 %v475, %v257
    %v480 = vmul.f32 %v476, %v262
    %v481 = vmul.f32 %v477, %v267
    %v482 = vmul.f32 %v478, %v272
    %v483 = vpack.c.bf16 %v275, %v274
    %v484 = vpack.c.bf16 %v277, %v276
    %s485 = scalar_lea.vmem [#allocation6], 256
    %v486 = vld [vmem:[%s485] sm:$0xff]
    %v487 = vld [vmem:[%s485 + $0x8] sm:$0xff]
    %v488 = vld [vmem:[%s485 + $0x10] sm:$0xff]
    %v489 = vld [vmem:[%s485 + $0x18] sm:$0xff]
    %v490 = vld [vmem:[%s485 + $0x20] sm:$0xff]
    %v491 = vld [vmem:[%s485 + $0x28] sm:$0xff]
    %v492 = vld [vmem:[%s485 + $0x30] sm:$0xff]
    %v493 = vld [vmem:[%s485 + $0x38] sm:$0xff]
    %v494 = vld [vmem:[%s485 + $0x40] sm:$0xff]
    %v495 = vld [vmem:[%s485 + $0x48] sm:$0xff]
    %v496 = vld [vmem:[%s485 + $0x50] sm:$0xff]
    %v497 = vld [vmem:[%s485 + $0x58] sm:$0xff]
    %v498 = vld [vmem:[%s485 + $0x60] sm:$0xff]
    %v499 = vld [vmem:[%s485 + $0x68] sm:$0xff]
    %v500 = vld [vmem:[%s485 + $0x70] sm:$0xff]
    %v501 = vld [vmem:[%s485 + $0x78] sm:$0xff]
    %s502 = scalar_lea.vmem %s4, 4
    %v503 = vld [vmem:[%s502] sm:$0x3]
    %v505 = vlaneseq
    %v506 = vshrl.u32 %v505, 7
    %v507 = vsub.s32 0, %v506
    %v508 = vrot.slane %v503, %v507
    %v509 = vlaneseq
    %v510 = vshrl.u32 %v509, 7
    %v511 = vsub.s32 1, %v510
    %v512 = vrot.slane %v503, %v511
    %v531 = vunpack.c.l.b16 %v486
    %v532 = vunpack.c.h.b16 %v486
    %v533 = vunpack.c.l.b16 %v487
    %v534 = vunpack.c.h.b16 %v487
    %v535 = vunpack.c.l.b16 %v488
    %v536 = vunpack.c.h.b16 %v488
    %v537 = vunpack.c.l.b16 %v489
    %v538 = vunpack.c.h.b16 %v489
    %v539 = vunpack.c.l.b16 %v490
    %v540 = vunpack.c.h.b16 %v490
    %v541 = vunpack.c.l.b16 %v491
    %v542 = vunpack.c.h.b16 %v491
    %v543 = vunpack.c.l.b16 %v492
    %v544 = vunpack.c.h.b16 %v492
    %v545 = vunpack.c.l.b16 %v493
    %v546 = vunpack.c.h.b16 %v493
    %v547 = vunpack.c.l.b16 %v494
    %v548 = vunpack.c.h.b16 %v494
    %v549 = vunpack.c.l.b16 %v495
    %v550 = vunpack.c.h.b16 %v495
    %v551 = vunpack.c.l.b16 %v496
    %v552 = vunpack.c.h.b16 %v496
    %v553 = vunpack.c.l.b16 %v497
    %v554 = vunpack.c.h.b16 %v497
    %v555 = vunpack.c.l.b16 %v498
    %v556 = vunpack.c.h.b16 %v498
    %v557 = vunpack.c.l.b16 %v499
    %v558 = vunpack.c.h.b16 %v499
    %v559 = vunpack.c.l.b16 %v500
    %v560 = vunpack.c.h.b16 %v500
    %v561 = vunpack.c.l.b16 %v501
    %v562 = vunpack.c.h.b16 %v501
    %v563 = vpack.c.b16 %v533, %v531
    %v564 = vpack.c.b16 %v534, %v532
    %v565 = vpack.c.b16 %v537, %v535
    %v566 = vpack.c.b16 %v538, %v536
    %v567 = vpack.c.b16 %v541, %v539
    %v568 = vpack.c.b16 %v542, %v540
    %v569 = vpack.c.b16 %v545, %v543
    %v570 = vpack.c.b16 %v546, %v544
    %v571 = vpack.c.b16 %v549, %v547
    %v572 = vpack.c.b16 %v550, %v548
    %v573 = vpack.c.b16 %v553, %v551
    %v574 = vpack.c.b16 %v554, %v552
    %v575 = vpack.c.b16 %v557, %v555
    %v576 = vpack.c.b16 %v558, %v556
    %v577 = vpack.c.b16 %v561, %v559
    %v578 = vpack.c.b16 %v562, %v560
    %595 = vmatprep.subr.bf16.mxu0 %v564
    %596 = vmatpush1.bf16.msra.mxu0 %v563
    %597 = vmatprep.subr.bf16.mxu0 %v566
    %598 = vmatpush1.bf16.msra.mxu0 %v565
    %599 = vmatprep.subr.bf16.mxu0 %v568
    %600 = vmatpush1.bf16.msra.mxu0 %v567
    %601 = vmatprep.subr.bf16.mxu0 %v570
    %602 = vmatpush1.bf16.msra.mxu0 %v569
    %603 = vmatprep.subr.bf16.mxu0 %v572
    %604 = vmatpush1.bf16.msra.mxu0 %v571
    %605 = vmatprep.subr.bf16.mxu0 %v574
    %606 = vmatpush1.bf16.msra.mxu0 %v573
    %607 = vmatprep.subr.bf16.mxu0 %v576
    %608 = vmatpush1.bf16.msra.mxu0 %v575
    %609 = vmatprep.subr.bf16.mxu0 %v578
    %610 = vmatpush1.bf16.msra.mxu0 %v577
    %611 = vmatprep.subr.bf16.mxu0 0
    %612 = vmatpush1.bf16.msra.mxu0 0
    %613 = vmatprep.subr.bf16.mxu0 0
    %614 = vmatpush1.bf16.msra.mxu0 0
    %615 = vmatprep.subr.bf16.mxu0 0
    %616 = vmatpush1.bf16.msra.mxu0 0
    %617 = vmatprep.subr.bf16.mxu0 0
    %618 = vmatpush1.bf16.msra.mxu0 0
    %619 = vmatprep.subr.bf16.mxu0 0
    %620 = vmatpush1.bf16.msra.mxu0 0
    %621 = vmatprep.subr.bf16.mxu0 0
    %622 = vmatpush1.bf16.msra.mxu0 0
    %623 = vmatprep.subr.bf16.mxu0 0
    %624 = vmatpush1.bf16.msra.mxu0 0
    %625 = vmatprep.subr.bf16.mxu0 0
    %626 = vmatpush1.bf16.msra.mxu0 0
    %627 = vmatprep.mubr.bf16.mxu0 0
    %628 = vmatmul.mubr.bf16.gmra.mrb[0].mxu0 %v483
    %v629 = vpop.f32.mrb[0].mxu0
    %v630 = vadd.f32 %v508, %v629
    %v631 = vpop.f32.mrb[0].mxu0
    %v632 = vadd.f32 %v512, %v631
    %v633 = vpop.f32.mrb[0].mxu0
    %v634 = vadd.f32 %v508, %v633
    %v635 = vpop.f32.mrb[0].mxu0
    %v636 = vadd.f32 %v512, %v635
    %637 = vmatprep.mubr.bf16.mxu0 0
    %638 = vmatmul.mubr.bf16.gmra.mrb[0].mxu0 %v484
    %v639 = vpop.f32.mrb[0].mxu0
    %v640 = vadd.f32 %v508, %v639
    %v641 = vpop.f32.mrb[0].mxu0
    %v642 = vadd.f32 %v512, %v641
    %v643 = vpop.f32.mrb[0].mxu0
    %v644 = vadd.f32 %v508, %v643
    %v645 = vpop.f32.mrb[0].mxu0
    %v646 = vadd.f32 %v512, %v645
    %647 = vdwg.mxu0
    %v648 = vmax.f32 %v630, 0.0
    %v649 = vmax.f32 %v634, 0.0
    %v650 = vmax.f32 %v640, 0.0
    %v651 = vmax.f32 %v644, 0.0
    %v652 = vtanh.pop %v632
    %v653 = vtanh.pop %v636
    %v654 = vtanh.pop %v642
    %v655 = vtanh.pop %v646
    %s656 = sld [smem:[#allocation2 + $0x101]]
    %v657 = vstv %s656
    %v658 = vmul.f32 %v657, %v274
    %v659 = vmul.f32 %v657, %v275
    %v660 = vmul.f32 %v657, %v276
    %v661 = vmul.f32 %v657, %v277
    %s662 = sld [smem:[#allocation2 + $0x102]]
    %v663 = vstv %s662
    %v664 = vmul.f32 %v663, %v648
    %v665 = vmul.f32 %v663, %v649
    %v666 = vmul.f32 %v663, %v650
    %v667 = vmul.f32 %v663, %v651
    %v668 = vadd.f32 %v658, %v664
    %v669 = vadd.f32 %v659, %v665
    %v670 = vadd.f32 %v660, %v666
    %v671 = vadd.f32 %v661, %v667
    %s672 = sld [smem:[#allocation2 + $0x103]]
    %v673 = vstv %s672
    %v674 = vmul.f32 %v673, %v652
    %v675 = vmul.f32 %v673, %v653
    %v676 = vmul.f32 %v673, %v654
    %v677 = vmul.f32 %v673, %v655
    %v678 = vadd.f32 %v668, %v674
    %v679 = vadd.f32 %v669, %v675
    %v680 = vadd.f32 %v670, %v676
    %v681 = vadd.f32 %v671, %v677
    %v682 = vmul.f32 %v678, %v257
    %v683 = vmul.f32 %v679, %v262
    %v684 = vmul.f32 %v680, %v267
    %v685 = vmul.f32 %v681, %v272
    %v686 = vadd.f32 %v479, %v682
    %v687 = vadd.f32 %v480, %v683
    %v688 = vadd.f32 %v481, %v684
    %v689 = vadd.f32 %v482, %v685
    %s690 = scalar_lea.vmem [#allocation7], 32
    %691 = vst [vmem:[%s690] sm:$0xff] %v686
    %692 = vst [vmem:[%s690 + $0x8] sm:$0xff] %v687
    %693 = vst [vmem:[%s690 + $0x10] sm:$0xff] %v688
    %694 = vst [vmem:[%s690 + $0x18] sm:$0xff] %v689
    %s695 = scalar_lea.vmem [#allocation6], 384
    %v696 = vld [vmem:[%s695] sm:$0xff]
    %v697 = vld [vmem:[%s695 + $0x8] sm:$0xff]
    %v698 = vld [vmem:[%s695 + $0x10] sm:$0xff]
    %v699 = vld [vmem:[%s695 + $0x18] sm:$0xff]
    %v700 = vld [vmem:[%s695 + $0x20] sm:$0xff]
    %v701 = vld [vmem:[%s695 + $0x28] sm:$0xff]
    %v702 = vld [vmem:[%s695 + $0x30] sm:$0xff]
    %v703 = vld [vmem:[%s695 + $0x38] sm:$0xff]
    %v704 = vld [vmem:[%s695 + $0x40] sm:$0xff]
    %v705 = vld [vmem:[%s695 + $0x48] sm:$0xff]
    %v706 = vld [vmem:[%s695 + $0x50] sm:$0xff]
    %v707 = vld [vmem:[%s695 + $0x58] sm:$0xff]
    %v708 = vld [vmem:[%s695 + $0x60] sm:$0xff]
    %v709 = vld [vmem:[%s695 + $0x68] sm:$0xff]
    %v710 = vld [vmem:[%s695 + $0x70] sm:$0xff]
    %v711 = vld [vmem:[%s695 + $0x78] sm:$0xff]
    %s712 = scalar_lea.vmem %s4, 6
    %v713 = vld [vmem:[%s712] sm:$0x3]
    %v715 = vlaneseq
    %v716 = vshrl.u32 %v715, 7
    %v717 = vsub.s32 0, %v716
    %v718 = vrot.slane %v713, %v717
    %v719 = vlaneseq
    %v720 = vshrl.u32 %v719, 7
    %v721 = vsub.s32 1, %v720
    %v722 = vrot.slane %v713, %v721
    %v741 = vunpack.c.l.b16 %v696
    %v742 = vunpack.c.h.b16 %v696
    %v743 = vunpack.c.l.b16 %v697
    %v744 = vunpack.c.h.b16 %v697
    %v745 = vunpack.c.l.b16 %v698
    %v746 = vunpack.c.h.b16 %v698
    %v747 = vunpack.c.l.b16 %v699
    %v748 = vunpack.c.h.b16 %v699
    %v749 = vunpack.c.l.b16 %v700
    %v750 = vunpack.c.h.b16 %v700
    %v751 = vunpack.c.l.b16 %v701
    %v752 = vunpack.c.h.b16 %v701
    %v753 = vunpack.c.l.b16 %v702
    %v754 = vunpack.c.h.b16 %v702
    %v755 = vunpack.c.l.b16 %v703
    %v756 = vunpack.c.h.b16 %v703
    %v757 = vunpack.c.l.b16 %v704
    %v758 = vunpack.c.h.b16 %v704
    %v759 = vunpack.c.l.b16 %v705
    %v760 = vunpack.c.h.b16 %v705
    %v761 = vunpack.c.l.b16 %v706
    %v762 = vunpack.c.h.b16 %v706
    %v763 = vunpack.c.l.b16 %v707
    %v764 = vunpack.c.h.b16 %v707
    %v765 = vunpack.c.l.b16 %v708
    %v766 = vunpack.c.h.b16 %v708
    %v767 = vunpack.c.l.b16 %v709
    %v768 = vunpack.c.h.b16 %v709
    %v769 = vunpack.c.l.b16 %v710
    %v770 = vunpack.c.h.b16 %v710
    %v771 = vunpack.c.l.b16 %v711
    %v772 = vunpack.c.h.b16 %v711
    %v773 = vpack.c.b16 %v743, %v741
    %v774 = vpack.c.b16 %v744, %v742
    %v775 = vpack.c.b16 %v747, %v745
    %v776 = vpack.c.b16 %v748, %v746
    %v777 = vpack.c.b16 %v751, %v749
    %v778 = vpack.c.b16 %v752, %v750
    %v779 = vpack.c.b16 %v755, %v753
    %v780 = vpack.c.b16 %v756, %v754
    %v781 = vpack.c.b16 %v759, %v757
    %v782 = vpack.c.b16 %v760, %v758
    %v783 = vpack.c.b16 %v763, %v761
    %v784 = vpack.c.b16 %v764, %v762
    %v785 = vpack.c.b16 %v767, %v765
    %v786 = vpack.c.b16 %v768, %v766
    %v787 = vpack.c.b16 %v771, %v769
    %v788 = vpack.c.b16 %v772, %v770
    %805 = vmatprep.subr.bf16.mxu0 %v774
    %806 = vmatpush1.bf16.msra.mxu0 %v773
    %807 = vmatprep.subr.bf16.mxu0 %v776
    %808 = vmatpush1.bf16.msra.mxu0 %v775
    %809 = vmatprep.subr.bf16.mxu0 %v778
    %810 = vmatpush1.bf16.msra.mxu0 %v777
    %811 = vmatprep.subr.bf16.mxu0 %v780
    %812 = vmatpush1.bf16.msra.mxu0 %v779
    %813 = vmatprep.subr.bf16.mxu0 %v782
    %814 = vmatpush1.bf16.msra.mxu0 %v781
    %815 = vmatprep.subr.bf16.mxu0 %v784
    %816 = vmatpush1.bf16.msra.mxu0 %v783
    %817 = vmatprep.subr.bf16.mxu0 %v786
    %818 = vmatpush1.bf16.msra.mxu0 %v785
    %819 = vmatprep.subr.bf16.mxu0 %v788
    %820 = vmatpush1.bf16.msra.mxu0 %v787
    %821 = vmatprep.subr.bf16.mxu0 0
    %822 = vmatpush1.bf16.msra.mxu0 0
    %823 = vmatprep.subr.bf16.mxu0 0
    %824 = vmatpush1.bf16.msra.mxu0 0
    %825 = vmatprep.subr.bf16.mxu0 0
    %826 = vmatpush1.bf16.msra.mxu0 0
    %827 = vmatprep.subr.bf16.mxu0 0
    %828 = vmatpush1.bf16.msra.mxu0 0
    %829 = vmatprep.subr.bf16.mxu0 0
    %830 = vmatpush1.bf16.msra.mxu0 0
    %831 = vmatprep.subr.bf16.mxu0 0
    %832 = vmatpush1.bf16.msra.mxu0 0
    %833 = vmatprep.subr.bf16.mxu0 0
    %834 = vmatpush1.bf16.msra.mxu0 0
    %835 = vmatprep.subr.bf16.mxu0 0
    %836 = vmatpush1.bf16.msra.mxu0 0
    %837 = vmatprep.mubr.bf16.mxu0 0
    %838 = vmatmul.mubr.bf16.gmra.mrb[0].mxu0 %v57
    %v839 = vpop.f32.mrb[0].mxu0
    %v840 = vadd.f32 %v718, %v839
    %v841 = vpop.f32.mrb[0].mxu0
    %v842 = vadd.f32 %v722, %v841
    %v843 = vpop.f32.mrb[0].mxu0
    %v844 = vadd.f32 %v718, %v843
    %v845 = vpop.f32.mrb[0].mxu0
    %v846 = vadd.f32 %v722, %v845
    %847 = vmatprep.mubr.bf16.mxu0 0
    %848 = vmatmul.mubr.bf16.gmra.mrb[0].mxu0 %v58
    %v849 = vpop.f32.mrb[0].mxu0
    %v850 = vadd.f32 %v718, %v849
    %v851 = vpop.f32.mrb[0].mxu0
    %v852 = vadd.f32 %v722, %v851
    %v853 = vpop.f32.mrb[0].mxu0
    %v854 = vadd.f32 %v718, %v853
    %v855 = vpop.f32.mrb[0].mxu0
    %v856 = vadd.f32 %v722, %v855
    %857 = vdwg.mxu0
    %v858 = vmax.f32 %v840, 0.0
    %v859 = vmax.f32 %v844, 0.0
    %v860 = vmax.f32 %v850, 0.0
    %v861 = vmax.f32 %v854, 0.0
    %v862 = vtanh.pop %v842
    %v863 = vtanh.pop %v846
    %v864 = vtanh.pop %v852
    %v865 = vtanh.pop %v856
    %s866 = sld [smem:[#allocation2 + $0x181]]
    %v867 = vstv %s866
    %v868 = vmul.f32 %v867, %v49
    %v869 = vmul.f32 %v867, %v50
    %v870 = vmul.f32 %v867, %v51
    %v871 = vmul.f32 %v867, %v52
    %s872 = sld [smem:[#allocation2 + $0x182]]
    %v873 = vstv %s872
    %v874 = vmul.f32 %v873, %v858
    %v875 = vmul.f32 %v873, %v859
    %v876 = vmul.f32 %v873, %v860
    %v877 = vmul.f32 %v873, %v861
    %v878 = vadd.f32 %v868, %v874
    %v879 = vadd.f32 %v869, %v875
    %v880 = vadd.f32 %v870, %v876
    %v881 = vadd.f32 %v871, %v877
    %s882 = sld [smem:[#allocation2 + $0x183]]
    %v883 = vstv %s882
    %v884 = vmul.f32 %v883, %v862
    %v885 = vmul.f32 %v883, %v863
    %v886 = vmul.f32 %v883, %v864
    %v887 = vmul.f32 %v883, %v865
    %v888 = vadd.f32 %v878, %v884
    %v889 = vadd.f32 %v879, %v885
    %v890 = vadd.f32 %v880, %v886
    %v891 = vadd.f32 %v881, %v887
    %v892 = vmul.f32 %v888, %v257
    %v893 = vmul.f32 %v889, %v262
    %v894 = vmul.f32 %v890, %v267
    %v895 = vmul.f32 %v891, %v272
    %s896 = scalar_lea.vmem [#allocation6], 512
    %v897 = vld [vmem:[%s896] sm:$0xff]
    %v898 = vld [vmem:[%s896 + $0x8] sm:$0xff]
    %v899 = vld [vmem:[%s896 + $0x10] sm:$0xff]
    %v900 = vld [vmem:[%s896 + $0x18] sm:$0xff]
    %v901 = vld [vmem:[%s896 + $0x20] sm:$0xff]
    %v902 = vld [vmem:[%s896 + $0x28] sm:$0xff]
    %v903 = vld [vmem:[%s896 + $0x30] sm:$0xff]
    %v904 = vld [vmem:[%s896 + $0x38] sm:$0xff]
    %v905 = vld [vmem:[%s896 + $0x40] sm:$0xff]
    %v906 = vld [vmem:[%s896 + $0x48] sm:$0xff]
    %v907 = vld [vmem:[%s896 + $0x50] sm:$0xff]
    %v908 = vld [vmem:[%s896 + $0x58] sm:$0xff]
    %v909 = vld [vmem:[%s896 + $0x60] sm:$0xff]
    %v910 = vld [vmem:[%s896 + $0x68] sm:$0xff]
    %v911 = vld [vmem:[%s896 + $0x70] sm:$0xff]
    %v912 = vld [vmem:[%s896 + $0x78] sm:$0xff]
    %s913 = scalar_lea.vmem %s4, 8
    %v914 = vld [vmem:[%s913] sm:$0x3]
    %v916 = vlaneseq
    %v917 = vshrl.u32 %v916, 7
    %v918 = vsub.s32 0, %v917
    %v919 = vrot.slane %v914, %v918
    %v920 = vlaneseq
    %v921 = vshrl.u32 %v920, 7
    %v922 = vsub.s32 1, %v921
    %v923 = vrot.slane %v914, %v922
    %v942 = vunpack.c.l.b16 %v897
    %v943 = vunpack.c.h.b16 %v897
    %v944 = vunpack.c.l.b16 %v898
    %v945 = vunpack.c.h.b16 %v898
    %v946 = vunpack.c.l.b16 %v899
    %v947 = vunpack.c.h.b16 %v899
    %v948 = vunpack.c.l.b16 %v900
    %v949 = vunpack.c.h.b16 %v900
    %v950 = vunpack.c.l.b16 %v901
    %v951 = vunpack.c.h.b16 %v901
    %v952 = vunpack.c.l.b16 %v902
    %v953 = vunpack.c.h.b16 %v902
    %v954 = vunpack.c.l.b16 %v903
    %v955 = vunpack.c.h.b16 %v903
    %v956 = vunpack.c.l.b16 %v904
    %v957 = vunpack.c.h.b16 %v904
    %v958 = vunpack.c.l.b16 %v905
    %v959 = vunpack.c.h.b16 %v905
    %v960 = vunpack.c.l.b16 %v906
    %v961 = vunpack.c.h.b16 %v906
    %v962 = vunpack.c.l.b16 %v907
    %v963 = vunpack.c.h.b16 %v907
    %v964 = vunpack.c.l.b16 %v908
    %v965 = vunpack.c.h.b16 %v908
    %v966 = vunpack.c.l.b16 %v909
    %v967 = vunpack.c.h.b16 %v909
    %v968 = vunpack.c.l.b16 %v910
    %v969 = vunpack.c.h.b16 %v910
    %v970 = vunpack.c.l.b16 %v911
    %v971 = vunpack.c.h.b16 %v911
    %v972 = vunpack.c.l.b16 %v912
    %v973 = vunpack.c.h.b16 %v912
    %v974 = vpack.c.b16 %v944, %v942
    %v975 = vpack.c.b16 %v945, %v943
    %v976 = vpack.c.b16 %v948, %v946
    %v977 = vpack.c.b16 %v949, %v947
    %v978 = vpack.c.b16 %v952, %v950
    %v979 = vpack.c.b16 %v953, %v951
    %v980 = vpack.c.b16 %v956, %v954
    %v981 = vpack.c.b16 %v957, %v955
    %v982 = vpack.c.b16 %v960, %v958
    %v983 = vpack.c.b16 %v961, %v959
    %v984 = vpack.c.b16 %v964, %v962
    %v985 = vpack.c.b16 %v965, %v963
    %v986 = vpack.c.b16 %v968, %v966
    %v987 = vpack.c.b16 %v969, %v967
    %v988 = vpack.c.b16 %v972, %v970
    %v989 = vpack.c.b16 %v973, %v971
    %1006 = vmatprep.subr.bf16.mxu0 %v975
    %1007 = vmatpush1.bf16.msra.mxu0 %v974
    %1008 = vmatprep.subr.bf16.mxu0 %v977
    %1009 = vmatpush1.bf16.msra.mxu0 %v976
    %1010 = vmatprep.subr.bf16.mxu0 %v979
    %1011 = vmatpush1.bf16.msra.mxu0 %v978
    %1012 = vmatprep.subr.bf16.mxu0 %v981
    %1013 = vmatpush1.bf16.msra.mxu0 %v980
    %1014 = vmatprep.subr.bf16.mxu0 %v983
    %1015 = vmatpush1.bf16.msra.mxu0 %v982
    %1016 = vmatprep.subr.bf16.mxu0 %v985
    %1017 = vmatpush1.bf16.msra.mxu0 %v984
    %1018 = vmatprep.subr.bf16.mxu0 %v987
    %1019 = vmatpush1.bf16.msra.mxu0 %v986
    %1020 = vmatprep.subr.bf16.mxu0 %v989
    %1021 = vmatpush1.bf16.msra.mxu0 %v988
    %1022 = vmatprep.subr.bf16.mxu0 0
    %1023 = vmatpush1.bf16.msra.mxu0 0
    %1024 = vmatprep.subr.bf16.mxu0 0
    %1025 = vmatpush1.bf16.msra.mxu0 0
    %1026 = vmatprep.subr.bf16.mxu0 0
    %1027 = vmatpush1.bf16.msra.mxu0 0
    %1028 = vmatprep.subr.bf16.mxu0 0
    %1029 = vmatpush1.bf16.msra.mxu0 0
    %1030 = vmatprep.subr.bf16.mxu0 0
    %1031 = vmatpush1.bf16.msra.mxu0 0
    %1032 = vmatprep.subr.bf16.mxu0 0
    %1033 = vmatpush1.bf16.msra.mxu0 0
    %1034 = vmatprep.subr.bf16.mxu0 0
    %1035 = vmatpush1.bf16.msra.mxu0 0
    %1036 = vmatprep.subr.bf16.mxu0 0
    %1037 = vmatpush1.bf16.msra.mxu0 0
    %1038 = vmatprep.mubr.bf16.mxu0 0
    %1039 = vmatmul.mubr.bf16.gmra.mrb[0].mxu0 %v483
    %v1040 = vpop.f32.mrb[0].mxu0
    %v1041 = vadd.f32 %v919, %v1040
    %v1042 = vpop.f32.mrb[0].mxu0
    %v1043 = vadd.f32 %v923, %v1042
    %v1044 = vpop.f32.mrb[0].mxu0
    %v1045 = vadd.f32 %v919, %v1044
    %v1046 = vpop.f32.mrb[0].mxu0
    %v1047 = vadd.f32 %v923, %v1046
    %1048 = vmatprep.mubr.bf16.mxu0 0
    %1049 = vmatmul.mubr.bf16.gmra.mrb[0].mxu0 %v484
    %v1050 = vpop.f32.mrb[0].mxu0
    %v1051 = vadd.f32 %v919, %v1050
    %v1052 = vpop.f32.mrb[0].mxu0
    %v1053 = vadd.f32 %v923, %v1052
    %v1054 = vpop.f32.mrb[0].mxu0
    %v1055 = vadd.f32 %v919, %v1054
    %v1056 = vpop.f32.mrb[0].mxu0
    %v1057 = vadd.f32 %v923, %v1056
    %1058 = vdwg.mxu0
    %v1059 = vmax.f32 %v1041, 0.0
    %v1060 = vmax.f32 %v1045, 0.0
    %v1061 = vmax.f32 %v1051, 0.0
    %v1062 = vmax.f32 %v1055, 0.0
    %v1063 = vtanh.pop %v1043
    %v1064 = vtanh.pop %v1047
    %v1065 = vtanh.pop %v1053
    %v1066 = vtanh.pop %v1057
    %s1067 = sld [smem:[#allocation2 + $0x201]]
    %v1068 = vstv %s1067
    %v1069 = vmul.f32 %v1068, %v274
    %v1070 = vmul.f32 %v1068, %v275
    %v1071 = vmul.f32 %v1068, %v276
    %v1072 = vmul.f32 %v1068, %v277
    %s1073 = sld [smem:[#allocation2 + $0x202]]
    %v1074 = vstv %s1073
    %v1075 = vmul.f32 %v1074, %v1059
    %v1076 = vmul.f32 %v1074, %v1060
    %v1077 = vmul.f32 %v1074, %v1061
    %v1078 = vmul.f32 %v1074, %v1062
    %v1079 = vadd.f32 %v1069, %v1075
    %v1080 = vadd.f32 %v1070, %v1076
    %v1081 = vadd.f32 %v1071, %v1077
    %v1082 = vadd.f32 %v1072, %v1078
    %s1083 = sld [smem:[#allocation2 + $0x203]]
    %v1084 = vstv %s1083
    %v1085 = vmul.f32 %v1084, %v1063
    %v1086 = vmul.f32 %v1084, %v1064
    %v1087 = vmul.f32 %v1084, %v1065
    %v1088 = vmul.f32 %v1084, %v1066
    %v1089 = vadd.f32 %v1079, %v1085
    %v1090 = vadd.f32 %v1080, %v1086
    %v1091 = vadd.f32 %v1081, %v1087
    %v1092 = vadd.f32 %v1082, %v1088
    %v1093 = vmul.f32 %v1089, %v257
    %v1094 = vmul.f32 %v1090, %v262
    %v1095 = vmul.f32 %v1091, %v267
    %v1096 = vmul.f32 %v1092, %v272
    %v1097 = vadd.f32 %v892, %v1093
    %v1098 = vadd.f32 %v893, %v1094
    %v1099 = vadd.f32 %v894, %v1095
    %v1100 = vadd.f32 %v895, %v1096
    %v1101 = vpack.c.bf16 %v687, %v686
    %v1102 = vpack.c.bf16 %v689, %v688
    %s1103 = scalar_lea.vmem [#allocation6], 640
    %v1104 = vld [vmem:[%s1103] sm:$0xff]
    %v1105 = vld [vmem:[%s1103 + $0x8] sm:$0xff]
    %v1106 = vld [vmem:[%s1103 + $0x10] sm:$0xff]
    %v1107 = vld [vmem:[%s1103 + $0x18] sm:$0xff]
    %v1108 = vld [vmem:[%s1103 + $0x20] sm:$0xff]
    %v1109 = vld [vmem:[%s1103 + $0x28] sm:$0xff]
    %v1110 = vld [vmem:[%s1103 + $0x30] sm:$0xff]
    %v1111 = vld [vmem:[%s1103 + $0x38] sm:$0xff]
    %v1112 = vld [vmem:[%s1103 + $0x40] sm:$0xff]
    %v1113 = vld [vmem:[%s1103 + $0x48] sm:$0xff]
    %v1114 = vld [vmem:[%s1103 + $0x50] sm:$0xff]
    %v1115 = vld [vmem:[%s1103 + $0x58] sm:$0xff]
    %v1116 = vld [vmem:[%s1103 + $0x60] sm:$0xff]
    %v1117 = vld [vmem:[%s1103 + $0x68] sm:$0xff]
    %v1118 = vld [vmem:[%s1103 + $0x70] sm:$0xff]
    %v1119 = vld [vmem:[%s1103 + $0x78] sm:$0xff]
    %s1120 = scalar_lea.vmem %s4, 10
    %v1121 = vld [vmem:[%s1120] sm:$0x3]
    %v1123 = vlaneseq
    %v1124 = vshrl.u32 %v1123, 7
    %v1125 = vsub.s32 0, %v1124
    %v1126 = vrot.slane %v1121, %v1125
    %v1127 = vlaneseq
    %v1128 = vshrl.u32 %v1127, 7
    %v1129 = vsub.s32 1, %v1128
    %v1130 = vrot.slane %v1121, %v1129
    %v1149 = vunpack.c.l.b16 %v1104
    %v1150 = vunpack.c.h.b16 %v1104
    %v1151 = vunpack.c.l.b16 %v1105
    %v1152 = vunpack.c.h.b16 %v1105
    %v1153 = vunpack.c.l.b16 %v1106
    %v1154 = vunpack.c.h.b16 %v1106
    %v1155 = vunpack.c.l.b16 %v1107
    %v1156 = vunpack.c.h.b16 %v1107
    %v1157 = vunpack.c.l.b16 %v1108
    %v1158 = vunpack.c.h.b16 %v1108
    %v1159 = vunpack.c.l.b16 %v1109
    %v1160 = vunpack.c.h.b16 %v1109
    %v1161 = vunpack.c.l.b16 %v1110
    %v1162 = vunpack.c.h.b16 %v1110
    %v1163 = vunpack.c.l.b16 %v1111
    %v1164 = vunpack.c.h.b16 %v1111
    %v1165 = vunpack.c.l.b16 %v1112
    %v1166 = vunpack.c.h.b16 %v1112
    %v1167 = vunpack.c.l.b16 %v1113
    %v1168 = vunpack.c.h.b16 %v1113
    %v1169 = vunpack.c.l.b16 %v1114
    %v1170 = vunpack.c.h.b16 %v1114
    %v1171 = vunpack.c.l.b16 %v1115
    %v1172 = vunpack.c.h.b16 %v1115
    %v1173 = vunpack.c.l.b16 %v1116
    %v1174 = vunpack.c.h.b16 %v1116
    %v1175 = vunpack.c.l.b16 %v1117
    %v1176 = vunpack.c.h.b16 %v1117
    %v1177 = vunpack.c.l.b16 %v1118
    %v1178 = vunpack.c.h.b16 %v1118
    %v1179 = vunpack.c.l.b16 %v1119
    %v1180 = vunpack.c.h.b16 %v1119
    %v1181 = vpack.c.b16 %v1151, %v1149
    %v1182 = vpack.c.b16 %v1152, %v1150
    %v1183 = vpack.c.b16 %v1155, %v1153
    %v1184 = vpack.c.b16 %v1156, %v1154
    %v1185 = vpack.c.b16 %v1159, %v1157
    %v1186 = vpack.c.b16 %v1160, %v1158
    %v1187 = vpack.c.b16 %v1163, %v1161
    %v1188 = vpack.c.b16 %v1164, %v1162
    %v1189 = vpack.c.b16 %v1167, %v1165
    %v1190 = vpack.c.b16 %v1168, %v1166
    %v1191 = vpack.c.b16 %v1171, %v1169
    %v1192 = vpack.c.b16 %v1172, %v1170
    %v1193 = vpack.c.b16 %v1175, %v1173
    %v1194 = vpack.c.b16 %v1176, %v1174
    %v1195 = vpack.c.b16 %v1179, %v1177
    %v1196 = vpack.c.b16 %v1180, %v1178
    %1213 = vmatprep.subr.bf16.mxu0 %v1182
    %1214 = vmatpush1.bf16.msra.mxu0 %v1181
    %1215 = vmatprep.subr.bf16.mxu0 %v1184
    %1216 = vmatpush1.bf16.msra.mxu0 %v1183
    %1217 = vmatprep.subr.bf16.mxu0 %v1186
    %1218 = vmatpush1.bf16.msra.mxu0 %v1185
    %1219 = vmatprep.subr.bf16.mxu0 %v1188
    %1220 = vmatpush1.bf16.msra.mxu0 %v1187
    %1221 = vmatprep.subr.bf16.mxu0 %v1190
    %1222 = vmatpush1.bf16.msra.mxu0 %v1189
    %1223 = vmatprep.subr.bf16.mxu0 %v1192
    %1224 = vmatpush1.bf16.msra.mxu0 %v1191
    %1225 = vmatprep.subr.bf16.mxu0 %v1194
    %1226 = vmatpush1.bf16.msra.mxu0 %v1193
    %1227 = vmatprep.subr.bf16.mxu0 %v1196
    %1228 = vmatpush1.bf16.msra.mxu0 %v1195
    %1229 = vmatprep.subr.bf16.mxu0 0
    %1230 = vmatpush1.bf16.msra.mxu0 0
    %1231 = vmatprep.subr.bf16.mxu0 0
    %1232 = vmatpush1.bf16.msra.mxu0 0
    %1233 = vmatprep.subr.bf16.mxu0 0
    %1234 = vmatpush1.bf16.msra.mxu0 0
    %1235 = vmatprep.subr.bf16.mxu0 0
    %1236 = vmatpush1.bf16.msra.mxu0 0
    %1237 = vmatprep.subr.bf16.mxu0 0
    %1238 = vmatpush1.bf16.msra.mxu0 0
    %1239 = vmatprep.subr.bf16.mxu0 0
    %1240 = vmatpush1.bf16.msra.mxu0 0
    %1241 = vmatprep.subr.bf16.mxu0 0
    %1242 = vmatpush1.bf16.msra.mxu0 0
    %1243 = vmatprep.subr.bf16.mxu0 0
    %1244 = vmatpush1.bf16.msra.mxu0 0
    %1245 = vmatprep.mubr.bf16.mxu0 0
    %1246 = vmatmul.mubr.bf16.gmra.mrb[0].mxu0 %v1101
    %v1247 = vpop.f32.mrb[0].mxu0
    %v1248 = vadd.f32 %v1126, %v1247
    %v1249 = vpop.f32.mrb[0].mxu0
    %v1250 = vadd.f32 %v1130, %v1249
    %v1251 = vpop.f32.mrb[0].mxu0
    %v1252 = vadd.f32 %v1126, %v1251
    %v1253 = vpop.f32.mrb[0].mxu0
    %v1254 = vadd.f32 %v1130, %v1253
    %1255 = vmatprep.mubr.bf16.mxu0 0
    %1256 = vmatmul.mubr.bf16.gmra.mrb[0].mxu0 %v1102
    %v1257 = vpop.f32.mrb[0].mxu0
    %v1258 = vadd.f32 %v1126, %v1257
    %v1259 = vpop.f32.mrb[0].mxu0
    %v1260 = vadd.f32 %v1130, %v1259
    %v1261 = vpop.f32.mrb[0].mxu0
    %v1262 = vadd.f32 %v1126, %v1261
    %v1263 = vpop.f32.mrb[0].mxu0
    %v1264 = vadd.f32 %v1130, %v1263
    %1265 = vdwg.mxu0
    %v1266 = vmax.f32 %v1248, 0.0
    %v1267 = vmax.f32 %v1252, 0.0
    %v1268 = vmax.f32 %v1258, 0.0
    %v1269 = vmax.f32 %v1262, 0.0
    %v1270 = vtanh.pop %v1250
    %v1271 = vtanh.pop %v1254
    %v1272 = vtanh.pop %v1260
    %v1273 = vtanh.pop %v1264
    %s1274 = sld [smem:[#allocation2 + $0x281]]
    %v1275 = vstv %s1274
    %v1276 = vmul.f32 %v1275, %v686
    %v1277 = vmul.f32 %v1275, %v687
    %v1278 = vmul.f32 %v1275, %v688
    %v1279 = vmul.f32 %v1275, %v689
    %s1280 = sld [smem:[#allocation2 + $0x282]]
    %v1281 = vstv %s1280
    %v1282 = vmul.f32 %v1281, %v1266
    %v1283 = vmul.f32 %v1281, %v1267
    %v1284 = vmul.f32 %v1281, %v1268
    %v1285 = vmul.f32 %v1281, %v1269
    %v1286 = vadd.f32 %v1276, %v1282
    %v1287 = vadd.f32 %v1277, %v1283
    %v1288 = vadd.f32 %v1278, %v1284
    %v1289 = vadd.f32 %v1279, %v1285
    %s1290 = sld [smem:[#allocation2 + $0x283]]
    %v1291 = vstv %s1290
    %v1292 = vmul.f32 %v1291, %v1270
    %v1293 = vmul.f32 %v1291, %v1271
    %v1294 = vmul.f32 %v1291, %v1272
    %v1295 = vmul.f32 %v1291, %v1273
    %v1296 = vadd.f32 %v1286, %v1292
    %v1297 = vadd.f32 %v1287, %v1293
    %v1298 = vadd.f32 %v1288, %v1294
    %v1299 = vadd.f32 %v1289, %v1295
    %v1300 = vmul.f32 %v1296, %v257
    %v1301 = vmul.f32 %v1297, %v262
    %v1302 = vmul.f32 %v1298, %v267
    %v1303 = vmul.f32 %v1299, %v272
    %v1304 = vadd.f32 %v1097, %v1300
    %v1305 = vadd.f32 %v1098, %v1301
    %v1306 = vadd.f32 %v1099, %v1302
    %v1307 = vadd.f32 %v1100, %v1303
    %s1308 = scalar_lea.vmem [#allocation7], 64
    %1309 = vst [vmem:[%s1308] sm:$0xff] %v1304
    %1310 = vst [vmem:[%s1308 + $0x8] sm:$0xff] %v1305
    %1311 = vst [vmem:[%s1308 + $0x10] sm:$0xff] %v1306
    %1312 = vst [vmem:[%s1308 + $0x18] sm:$0xff] %v1307
    // Predicated region
    $region30: #{tpu_custom_call.1} parent=1 // pred_check
      _
    $region31: #{tpu_custom_call.1} parent=1 // pred_check_branch
      %1314 = sbr.rel (0) target = $region33
    $region32: #{tpu_custom_call.1} parent=1 // pred_region
      %s1316 = ssub.s32 1536, 1536
      %1317 = vsyncadd [#allocation4], %s1316
      %s1318 = sshll.u32 [#allocation7], 4
      %s1319 = int_to_ptr.vmem [resolvable:$true] %s1318
      %1324 = dma.vmem_to_hbm [thread:$0]  %s1319, 1536, %s5, [#allocation4], 128, 128, 8
    $region33: #{tpu_custom_call.1} parent=1 // pred_fallthru
      _
    // Predicated region
    $region34: #{tpu_custom_call.1} parent=1 // pred_check
      _
    $region35: #{tpu_custom_call.1} parent=1 // pred_check_branch
      %1326 = sbr.rel (0) target = $region37
    $region36: #{tpu_custom_call.1} parent=1 // pred_region
      %1327 = dma.done [#allocation4], 1536
    $region37: #{tpu_custom_call.1} parent=1 // pred_fallthru
      _
    %1328 = vsyncpa [#allocation3], 1
    %1329 = vsyncpa [#allocation4], 1
    %1330 = vsyncpa [#allocation5], 1

</llo_original>
